<compile_context>
chip_gen: v7x
topology: tpu7x:2x2x1
jax: 0.10.0
libtpu: 0.0.40
codegen_flags: <defaults>
</compile_context>

<pallas_src>
import numpy as np
import jax
import jax.numpy as jnp
from jax.experimental import pallas as pl
from jax.experimental.pallas import tpu as pltpu

LANE = 128


# ------------------------------ fused kernel --------------------------------

def make_pg_kernel(num_layers, T, BT, F_, ncp):
    """Whole Prediction_Generation forward for one grid step of BT = B*T rows."""
    L = num_layers

    def kernel(x_ref, w_in_ref, wbig_ref, wpf_ref, w_out_ref, bias_ref,
               f_out_ref, out_ref):
        # Input 1x1 conv: (BT, dim) @ (dim, F) + b_in
        f = (jnp.dot(x_ref[...], w_in_ref[...],
                     preferred_element_type=jnp.float32)
             + bias_ref[0:1, :F_])

        # Within-batch-element time index (batch elements are folded along the
        # sublane axis).  Used to zero the causal pad region of every shifted
        # tap AND to stop rolls leaking across batch boundaries.
        t_idx = jax.lax.broadcasted_iota(jnp.int32, (BT, F_), 0) % T

        def tap(src, d):
            # shifted[r] = src[r - d] (mod BT); rows with t < d are causal padding.
            shifted = pltpu.roll(src, d, 0)          # XLU sublane rotate, static shift
            return jnp.where(t_idx >= d, shifted, 0.0)

        for i in range(L):                           # statically unrolled
            d1 = 2 ** (L - 1 - i)
            d2 = 2 ** i
            # Taps [x[t-2d1], x[t-d1], x[t-2d2], x[t-d2], x[t]] -> one K=5F matmul.
            xcat = jnp.concatenate(
                [tap(f, 2 * d1), tap(f, d1), tap(f, 2 * d2), tap(f, d2), f],
                axis=-1)                             # (BT, 5F)
            z = (jnp.dot(xcat, wbig_ref[i], preferred_element_type=jnp.float32)
                 + bias_ref[1 + i:2 + i, :3 * F_])   # (BT, 3F) = [pre_h1|pre_h2|f@Wf'+bf']
            h = jnp.maximum(z[:, :2 * F_], 0.0)      # branch ReLU activations (BT, 2F)
            g = z[:, 2 * F_:]                        # folded fusion term (BT, F)
            # dropout -> identity (eval mode)
            f = jnp.maximum(
                g + jnp.dot(h, wpf_ref[i], preferred_element_type=jnp.float32),
                0.0) + f

        # Output 1x1 conv, lane-padded to ncp (=128) columns.
        logits = (jnp.dot(f, w_out_ref[...], preferred_element_type=jnp.float32)
                  + bias_ref[L + 1:L + 2, :ncp])

        pad_w = f_out_ref.shape[-1] - F_
        if pad_w:                                    # lane-dense f store
            f_out_ref[...] = jnp.concatenate(
                [f, jnp.zeros((BT, pad_w), f.dtype)], axis=-1)
        else:
            f_out_ref[...] = f
        out_ref[...] = logits.astype(out_ref.dtype)

    return kernel


# --------------------------- one-time param prep -----------------------------

def prepare_params(params, num_layers, num_f_maps, num_classes):
    """Transpose / fold / pack torch-layout Conv1d params once (float64 numpy)."""
    F_ = num_f_maps
    L = num_layers
    f64 = lambda a: np.asarray(a, dtype=np.float64)

    wbig_l, wpf_l, bbig_l = [], [], []
    for i in range(L):
        wd1, bd1, wp1, bp1 = [f64(a) for a in params["dil1"][i]]
        wd2, bd2, wp2, bp2 = [f64(a) for a in params["dil2"][i]]
        wf = f64(params["w_fus"][i])[:, :, 0]            # (F, 2F) torch layout
        bf = f64(params["b_fus"][i])                     # (F,)

        Wf_top, Wf_bot = wf[:, :F_].T, wf[:, F_:].T      # act on o1 / o2
        Wp1, Wp2 = wp1[:, :, 0].T, wp2[:, :, 0].T
        W1p, W2p = Wp1 @ Wf_top, Wp2 @ Wf_bot            # folded pointwise*fusion
        Wfp = Wf_top + Wf_bot
        bfp = bf + bp1 @ Wf_top + bp2 @ Wf_bot

        # Tap order matches the kernel concat: [x[t-2d1], x[t-d1], x[t-2d2], x[t-d2], x[t]]
        Wd1 = [wd1[:, :, k].T for k in range(3)]
        Wd2 = [wd2[:, :, k].T for k in range(3)]
        Z = np.zeros((F_, F_))
        wbig_l.append(np.block([
            [Wd1[0], Z,      Z],
            [Wd1[1], Z,      Z],
            [Z,      Wd2[0], Z],
            [Z,      Wd2[1], Z],
            [Wd1[2], Wd2[2], Wfp],
        ]))                                              # (5F, 3F)
        wpf_l.append(np.concatenate([W1p, W2p], axis=0)) # (2F, F)
        bbig_l.append(np.concatenate([bd1, bd2, bfp]))   # (3F,)

    ncp = ((num_classes + LANE - 1) // LANE) * LANE      # lane-pad classes
    bw = max(LANE, ncp, 3 * F_)

    w_out = np.zeros((F_, ncp))
    w_out[:, :num_classes] = f64(params["w_out"])[:, :, 0].T

    # All biases packed into one (L+2, bw) slab: row0=b_in, rows1..L=b_big, last=b_out.
    biases = np.zeros((L + 2, bw))
    biases[0, :F_] = f64(params["b_in"])
    biases[1:1 + L, :3 * F_] = np.stack(bbig_l)
    biases[L + 1, :num_classes] = f64(params["b_out"])

    asf32 = lambda a: jnp.asarray(a, dtype=jnp.float32)
    return {
        "w_in": asf32(f64(params["w_in"])[:, :, 0].T),   # (dim, F)
        "wbig": asf32(np.stack(wbig_l)),                 # (L, 5F, 3F)
        "wpf": asf32(np.stack(wpf_l)),                   # (L, 2F, F)
        "w_out": asf32(w_out),                           # (F, ncp)
        "biases": asf32(biases),                         # (L+2, bw)
    }


# ----------------------- grid-step selection (per chip) ----------------------

def _default_grid_steps(n_batch):
    """Use >=2 grid steps only when the chip has >1 TensorCore (v7x); otherwise
    fold the whole batch into the sublane dimension of a single grid step."""
    cores = 1
    try:
        dev = jax.devices()[0]
        for attr in ("num_cores", "core_count", "num_tensorcores"):
            v = getattr(dev, attr, None)
            if isinstance(v, int) and v > 0:
                cores = v
                break
    except Exception:
        pass
    for g in range(min(cores, n_batch), 0, -1):
        if n_batch % g == 0:
            return g
    return 1


# ----------------------- Prediction_Generation forward ----------------------

def prediction_generation_forward(x_nct, prep, num_layers, num_classes,
                                  grid_steps=None):
    """x_nct: (N, dim, T) torch layout.  Returns (f, out) both in (N, C, T)."""
    N, dim, T = x_nct.shape
    F_ = prep["w_in"].shape[1]
    ncp = prep["w_out"].shape[1]
    bw = prep["biases"].shape[1]
    L = num_layers

    G = int(grid_steps) if grid_steps is not None else _default_grid_steps(N)
    if N % G != 0:
        G = 1
    B = N // G
    BT = B * T                                            # rows per grid step

    # (N, dim, T) -> (N*T, dim): time on sublanes, channels on lanes.
    x = jnp.transpose(x_nct, (0, 2, 1)).reshape(N * T, dim)

    kernel = make_pg_kernel(L, T, BT, F_, ncp)

    cst2 = lambda shape: pl.BlockSpec(shape, lambda g: (0, 0))
    cst3 = lambda shape: pl.BlockSpec(shape, lambda g: (0, 0, 0))

    f_pad, out_pad = pl.pallas_call(
        kernel,
        out_shape=(jax.ShapeDtypeStruct((N * T, LANE), jnp.float32),
                   jax.ShapeDtypeStruct((N * T, ncp), jnp.float32)),
        grid=(G,),
        in_specs=[
            pl.BlockSpec((BT, dim), lambda g: (g, 0)),    # x (batch folded into rows)
            cst2((dim, F_)),                              # w_in
            cst3((L, 5 * F_, 3 * F_)),                    # fused dilated+fusion weights
            cst3((L, 2 * F_, F_)),                        # folded pointwise weights
            cst2((F_, ncp)),                              # w_out (lane padded)
            cst2((L + 2, bw)),                            # all biases, one slab
        ],
        out_specs=[
            pl.BlockSpec((BT, LANE), lambda g: (g, 0)),   # f (lane padded)
            pl.BlockSpec((BT, ncp), lambda g: (g, 0)),    # logits (lane padded)
        ],
        compiler_params=pltpu.CompilerParams(
            dimension_semantics=("parallel",)),
    )(x, prep["w_in"], prep["wbig"], prep["wpf"], prep["w_out"], prep["biases"])

    f = f_pad[:, :F_].reshape(N, T, F_)
    out = out_pad[:, :num_classes].reshape(N, T, num_classes)
    return jnp.transpose(f, (0, 2, 1)), jnp.transpose(out, (0, 2, 1))


# ----------------------- pure-JAX reference (for checking) ------------------

def _ref_forward(x_nct, params, num_layers):
    x = jnp.transpose(x_nct, (0, 2, 1))

    def c1x1(x, w, b):
        return jnp.einsum("ntc,oc->nto", x, w[:, :, 0]) + b

    def dil(x, d, wd, bd, wp, bp):
        N, T, F_ = x.shape
        xp = jnp.pad(x, ((0, 0), (2 * d, 0), (0, 0)))
        h = (jnp.einsum("ntc,oc->nto", xp[:, 0:T], wd[:, :, 0])
             + jnp.einsum("ntc,oc->nto", xp[:, d:d + T], wd[:, :, 1])
             + jnp.einsum("ntc,oc->nto", xp[:, 2 * d:2 * d + T], wd[:, :, 2]) + bd)
        h = jnp.maximum(h, 0.0)
        return x + jnp.einsum("ntc,oc->nto", h, wp[:, :, 0]) + bp

    f = c1x1(x, params["w_in"], params["b_in"])
    for i in range(num_layers):
        f_in = f
        d1 = dil(f, 2 ** (num_layers - 1 - i), *params["dil1"][i])
        d2 = dil(f, 2 ** i, *params["dil2"][i])
        cat = jnp.concatenate([d1, d2], axis=-1)
        f = jnp.maximum(
            jnp.einsum("ntc,oc->nto", cat, params["w_fus"][i][:, :, 0]) + params["b_fus"][i], 0.0
        ) + f_in
    out = c1x1(f, params["w_out"], params["b_out"])
    return jnp.transpose(f, (0, 2, 1)), jnp.transpose(out, (0, 2, 1))


# ------------------------------ parameters -----------------------------------

def init_params(key, num_layers, num_f_maps, dim, num_classes):
    """Deterministic synthetic parameters in torch Conv1d layout (Cout, Cin, K)."""
    keys = iter(jax.random.split(key, 4 + 12 * num_layers))

    def p(shape, scale=0.1):
        return scale * jax.random.normal(next(keys), shape, dtype=jnp.float32)

    params = {
        "w_in": p((num_f_maps, dim, 1)), "b_in": p((num_f_maps,)),
        "w_out": p((num_classes, num_f_maps, 1)), "b_out": p((num_classes,)),
        "dil1": [], "dil2": [], "w_fus": [], "b_fus": [],
    }
    for _ in range(num_layers):
        params["dil1"].append((p((num_f_maps, num_f_maps, 3)), p((num_f_maps,)),
                               p((num_f_maps, num_f_maps, 1)), p((num_f_maps,))))
        params["dil2"].append((p((num_f_maps, num_f_maps, 3)), p((num_f_maps,)),
                               p((num_f_maps, num_f_maps, 1)), p((num_f_maps,))))
        params["w_fus"].append(p((num_f_maps, 2 * num_f_maps, 1)))
        params["b_fus"].append(p((num_f_maps,)))
    return params


# --------------------------------- main --------------------------------------

if __name__ == "__main__":
    num_layers = 3
    num_f_maps = 32
    dim = 16
    num_classes = 6
    N, T = 2, 24

    key = jax.random.PRNGKey(0)
    k_x, k_p = jax.random.split(key)
    x = jax.random.normal(k_x, (N, dim, T), dtype=jnp.float32)   # torch (N, C, T) layout
    params = init_params(k_p, num_layers, num_f_maps, dim, num_classes)

    # One-time parameter preparation (all transposes / folding / packing).
    prep = prepare_params(params, num_layers, num_f_maps, num_classes)

    fwd = jax.jit(prediction_generation_forward, static_argnums=(2, 3))
    f, out = fwd(x, prep, num_layers, num_classes)
    f = jax.block_until_ready(f)
    out = jax.block_until_ready(out)

    f_ref, out_ref = _ref_forward(x, params, num_layers)
    assert f.shape == (N, num_f_maps, T) and out.shape == (N, num_classes, T)
    assert jnp.allclose(f, f_ref, atol=2e-4, rtol=2e-4)
    assert jnp.allclose(out, out_ref, atol=2e-4, rtol=2e-4)

    print("KERNEL_OK")
</pallas_src>

<mosaic_0001>
module attributes {stable_mosaic.version = 11 : i64} {
  func.func @kernel(%arg0: i32, %arg1: memref<48x16xf32, #tpu.memory_space<vmem>>, %arg2: memref<16x32xf32, #tpu.memory_space<vmem>>, %arg3: memref<3x160x96xf32, #tpu.memory_space<vmem>>, %arg4: memref<3x64x32xf32, #tpu.memory_space<vmem>>, %arg5: memref<32x128xf32, #tpu.memory_space<vmem>>, %arg6: memref<5x128xf32, #tpu.memory_space<vmem>>, %arg7: memref<48x128xf32, #tpu.memory_space<vmem>>, %arg8: memref<48x128xf32, #tpu.memory_space<vmem>>) attributes {dimension_semantics = [#tpu.dimension_semantics<parallel>], iteration_bounds = array<i64: 1>, scalar_prefetch = 0 : i64, scratch_operands = 0 : i64, tpu.core_type = #tpu.core_type<tc>, window_params = [{transform_indices = @transform_0, window_bounds = array<i64: 48, 16>}, {pipeline_mode = #tpu.pipeline_mode<synchronous>, transform_indices = @transform_1, window_bounds = array<i64: 16, 32>}, {pipeline_mode = #tpu.pipeline_mode<synchronous>, transform_indices = @transform_2, window_bounds = array<i64: 3, 160, 96>}, {pipeline_mode = #tpu.pipeline_mode<synchronous>, transform_indices = @transform_3, window_bounds = array<i64: 3, 64, 32>}, {pipeline_mode = #tpu.pipeline_mode<synchronous>, transform_indices = @transform_4, window_bounds = array<i64: 32, 128>}, {pipeline_mode = #tpu.pipeline_mode<synchronous>, transform_indices = @transform_5, window_bounds = array<i64: 5, 128>}, {transform_indices = @transform_6, window_bounds = array<i64: 48, 128>}, {transform_indices = @transform_7, window_bounds = array<i64: 48, 128>}]} {
    %c0 = arith.constant 0 : index
    %c0_0 = arith.constant 0 : index
    %0 = vector.load %arg1[%c0, %c0_0] : memref<48x16xf32, #tpu.memory_space<vmem>>, vector<48x16xf32>
    %c0_1 = arith.constant 0 : index
    %c0_2 = arith.constant 0 : index
    %1 = vector.load %arg2[%c0_1, %c0_2] : memref<16x32xf32, #tpu.memory_space<vmem>>, vector<16x32xf32>
    %cst = arith.constant dense<0.000000e+00> : vector<48x32xf32>
    %2 = tpu.matmul %0, %1, %cst {dimension_numbers = #tpu.dot_dimension_numbers<[1], [0], [0], [1], [0, 0, 1, 1], [], []>} : vector<48x16xf32>, vector<16x32xf32>, vector<48x32xf32> -> vector<48x32xf32>
    %c0_3 = arith.constant 0 : index
    %c0_4 = arith.constant 0 : index
    %3 = vector.load %arg6[%c0_3, %c0_4] : memref<5x128xf32, #tpu.memory_space<vmem>>, vector<1x32xf32>
    %4 = vector.broadcast %3 : vector<1x32xf32> to vector<48x32xf32>
    %5 = arith.addf %2, %4 : vector<48x32xf32>
    %6 = tpu.iota {dimensions = array<i32: 0>} : vector<48x32xi32>
    %c24_i32 = arith.constant 24 : i32
    %c0_i32 = arith.constant 0 : i32
    %7 = arith.cmpi eq, %c24_i32, %c0_i32 : i32
    %c1_i32 = arith.constant 1 : i32
    %8 = arith.select %7, %c1_i32, %c24_i32 : i32
    %9 = vector.broadcast %8 : i32 to vector<48x32xi32>
    %10 = arith.remsi %6, %9 : vector<48x32xi32>
    %c0_i32_5 = arith.constant 0 : i32
    %11 = vector.broadcast %c0_i32_5 : i32 to vector<48x32xi32>
    %12 = arith.cmpi ne, %10, %11 : vector<48x32xi32>
    %c0_i32_6 = arith.constant 0 : i32
    %13 = vector.broadcast %c0_i32_6 : i32 to vector<48x32xi32>
    %14 = arith.cmpi slt, %10, %13 : vector<48x32xi32>
    %c0_i32_7 = arith.constant 0 : i32
    %15 = arith.cmpi slt, %8, %c0_i32_7 : i32
    %16 = vector.broadcast %15 : i1 to vector<48x32xi1>
    %17 = vector.broadcast %16 : vector<48x32xi1> to vector<48x32xi1>
    %18 = arith.xori %14, %17 : vector<48x32xi1>
    %19 = arith.andi %18, %12 : vector<48x32xi1>
    %20 = vector.broadcast %8 : i32 to vector<48x32xi32>
    %21 = arith.addi %10, %20 : vector<48x32xi32>
    %22 = arith.select %19, %21, %10 : vector<48x32xi1>, vector<48x32xi32>
    %c8_i32 = arith.constant 8 : i32
    %23 = tpu.dynamic_rotate %5 by %c8_i32 dim 0 : vector<48x32xf32>, i32 -> vector<48x32xf32>
    %c8_i32_8 = arith.constant 8 : i32
    %24 = vector.broadcast %c8_i32_8 : i32 to vector<48x32xi32>
    %25 = arith.cmpi sge, %22, %24 : vector<48x32xi32>
    %cst_9 = arith.constant 0.000000e+00 : f32
    %26 = vector.broadcast %cst_9 : f32 to vector<48x32xf32>
    %27 = arith.select %25, %23, %26 : vector<48x32xi1>, vector<48x32xf32>
    %c4_i32 = arith.constant 4 : i32
    %28 = tpu.dynamic_rotate %5 by %c4_i32 dim 0 : vector<48x32xf32>, i32 -> vector<48x32xf32>
    %c4_i32_10 = arith.constant 4 : i32
    %29 = vector.broadcast %c4_i32_10 : i32 to vector<48x32xi32>
    %30 = arith.cmpi sge, %22, %29 : vector<48x32xi32>
    %cst_11 = arith.constant 0.000000e+00 : f32
    %31 = vector.broadcast %cst_11 : f32 to vector<48x32xf32>
    %32 = arith.select %30, %28, %31 : vector<48x32xi1>, vector<48x32xf32>
    %c2_i32 = arith.constant 2 : i32
    %33 = tpu.dynamic_rotate %5 by %c2_i32 dim 0 : vector<48x32xf32>, i32 -> vector<48x32xf32>
    %c2_i32_12 = arith.constant 2 : i32
    %34 = vector.broadcast %c2_i32_12 : i32 to vector<48x32xi32>
    %35 = arith.cmpi sge, %22, %34 : vector<48x32xi32>
    %cst_13 = arith.constant 0.000000e+00 : f32
    %36 = vector.broadcast %cst_13 : f32 to vector<48x32xf32>
    %37 = arith.select %35, %33, %36 : vector<48x32xi1>, vector<48x32xf32>
    %c1_i32_14 = arith.constant 1 : i32
    %38 = tpu.dynamic_rotate %5 by %c1_i32_14 dim 0 : vector<48x32xf32>, i32 -> vector<48x32xf32>
    %c1_i32_15 = arith.constant 1 : i32
    %39 = vector.broadcast %c1_i32_15 : i32 to vector<48x32xi32>
    %40 = arith.cmpi sge, %22, %39 : vector<48x32xi32>
    %cst_16 = arith.constant 0.000000e+00 : f32
    %41 = vector.broadcast %cst_16 : f32 to vector<48x32xf32>
    %42 = arith.select %40, %38, %41 : vector<48x32xi1>, vector<48x32xf32>
    %43 = tpu.concatenate %27, %32, %37, %42, %5 in 1 : vector<48x32xf32>, vector<48x32xf32>, vector<48x32xf32>, vector<48x32xf32>, vector<48x32xf32> -> vector<48x160xf32>
    %c0_17 = arith.constant 0 : index
    %c0_18 = arith.constant 0 : index
    %c0_19 = arith.constant 0 : index
    %44 = vector.load %arg3[%c0_17, %c0_18, %c0_19] : memref<3x160x96xf32, #tpu.memory_space<vmem>>, vector<1x160x96xf32>
    %45 = vector.shape_cast %44 : vector<1x160x96xf32> to vector<160x96xf32>
    %cst_20 = arith.constant dense<0.000000e+00> : vector<48x96xf32>
    %46 = tpu.matmul %43, %45, %cst_20 {dimension_numbers = #tpu.dot_dimension_numbers<[1], [0], [0], [1], [0, 0, 1, 1], [], []>} : vector<48x160xf32>, vector<160x96xf32>, vector<48x96xf32> -> vector<48x96xf32>
    %c1 = arith.constant 1 : index
    %c0_21 = arith.constant 0 : index
    %47 = vector.load %arg6[%c1, %c0_21] : memref<5x128xf32, #tpu.memory_space<vmem>>, vector<1x96xf32>
    %48 = vector.broadcast %47 : vector<1x96xf32> to vector<48x96xf32>
    %49 = arith.addf %46, %48 : vector<48x96xf32>
    %50 = vector.extract_strided_slice %49 {offsets = [0, 0], sizes = [48, 64], strides = [1, 1]} : vector<48x96xf32> to vector<48x64xf32>
    %cst_22 = arith.constant 0.000000e+00 : f32
    %51 = vector.broadcast %cst_22 : f32 to vector<48x64xf32>
    %52 = arith.maximumf %50, %51 : vector<48x64xf32>
    %53 = vector.extract_strided_slice %49 {offsets = [0, 64], sizes = [48, 32], strides = [1, 1]} : vector<48x96xf32> to vector<48x32xf32>
    %c0_23 = arith.constant 0 : index
    %c0_24 = arith.constant 0 : index
    %c0_25 = arith.constant 0 : index
    %54 = vector.load %arg4[%c0_23, %c0_24, %c0_25] : memref<3x64x32xf32, #tpu.memory_space<vmem>>, vector<1x64x32xf32>
    %55 = vector.shape_cast %54 : vector<1x64x32xf32> to vector<64x32xf32>
    %cst_26 = arith.constant dense<0.000000e+00> : vector<48x32xf32>
    %56 = tpu.matmul %52, %55, %cst_26 {dimension_numbers = #tpu.dot_dimension_numbers<[1], [0], [0], [1], [0, 0, 1, 1], [], []>} : vector<48x64xf32>, vector<64x32xf32>, vector<48x32xf32> -> vector<48x32xf32>
    %57 = arith.addf %53, %56 : vector<48x32xf32>
    %cst_27 = arith.constant 0.000000e+00 : f32
    %58 = vector.broadcast %cst_27 : f32 to vector<48x32xf32>
    %59 = arith.maximumf %57, %58 : vector<48x32xf32>
    %60 = arith.addf %59, %5 : vector<48x32xf32>
    %c4_i32_28 = arith.constant 4 : i32
    %61 = tpu.dynamic_rotate %60 by %c4_i32_28 dim 0 : vector<48x32xf32>, i32 -> vector<48x32xf32>
    %c4_i32_29 = arith.constant 4 : i32
    %62 = vector.broadcast %c4_i32_29 : i32 to vector<48x32xi32>
    %63 = arith.cmpi sge, %22, %62 : vector<48x32xi32>
    %cst_30 = arith.constant 0.000000e+00 : f32
    %64 = vector.broadcast %cst_30 : f32 to vector<48x32xf32>
    %65 = arith.select %63, %61, %64 : vector<48x32xi1>, vector<48x32xf32>
    %c2_i32_31 = arith.constant 2 : i32
    %66 = tpu.dynamic_rotate %60 by %c2_i32_31 dim 0 : vector<48x32xf32>, i32 -> vector<48x32xf32>
    %c2_i32_32 = arith.constant 2 : i32
    %67 = vector.broadcast %c2_i32_32 : i32 to vector<48x32xi32>
    %68 = arith.cmpi sge, %22, %67 : vector<48x32xi32>
    %cst_33 = arith.constant 0.000000e+00 : f32
    %69 = vector.broadcast %cst_33 : f32 to vector<48x32xf32>
    %70 = arith.select %68, %66, %69 : vector<48x32xi1>, vector<48x32xf32>
    %c4_i32_34 = arith.constant 4 : i32
    %71 = tpu.dynamic_rotate %60 by %c4_i32_34 dim 0 : vector<48x32xf32>, i32 -> vector<48x32xf32>
    %c4_i32_35 = arith.constant 4 : i32
    %72 = vector.broadcast %c4_i32_35 : i32 to vector<48x32xi32>
    %73 = arith.cmpi sge, %22, %72 : vector<48x32xi32>
    %cst_36 = arith.constant 0.000000e+00 : f32
    %74 = vector.broadcast %cst_36 : f32 to vector<48x32xf32>
    %75 = arith.select %73, %71, %74 : vector<48x32xi1>, vector<48x32xf32>
    %c2_i32_37 = arith.constant 2 : i32
    %76 = tpu.dynamic_rotate %60 by %c2_i32_37 dim 0 : vector<48x32xf32>, i32 -> vector<48x32xf32>
    %c2_i32_38 = arith.constant 2 : i32
    %77 = vector.broadcast %c2_i32_38 : i32 to vector<48x32xi32>
    %78 = arith.cmpi sge, %22, %77 : vector<48x32xi32>
    %cst_39 = arith.constant 0.000000e+00 : f32
    %79 = vector.broadcast %cst_39 : f32 to vector<48x32xf32>
    %80 = arith.select %78, %76, %79 : vector<48x32xi1>, vector<48x32xf32>
    %81 = tpu.concatenate %65, %70, %75, %80, %60 in 1 : vector<48x32xf32>, vector<48x32xf32>, vector<48x32xf32>, vector<48x32xf32>, vector<48x32xf32> -> vector<48x160xf32>
    %c1_40 = arith.constant 1 : index
    %c0_41 = arith.constant 0 : index
    %c0_42 = arith.constant 0 : index
    %82 = vector.load %arg3[%c1_40, %c0_41, %c0_42] : memref<3x160x96xf32, #tpu.memory_space<vmem>>, vector<1x160x96xf32>
    %83 = vector.shape_cast %82 : vector<1x160x96xf32> to vector<160x96xf32>
    %cst_43 = arith.constant dense<0.000000e+00> : vector<48x96xf32>
    %84 = tpu.matmul %81, %83, %cst_43 {dimension_numbers = #tpu.dot_dimension_numbers<[1], [0], [0], [1], [0, 0, 1, 1], [], []>} : vector<48x160xf32>, vector<160x96xf32>, vector<48x96xf32> -> vector<48x96xf32>
    %c2 = arith.constant 2 : index
    %c0_44 = arith.constant 0 : index
    %85 = vector.load %arg6[%c2, %c0_44] : memref<5x128xf32, #tpu.memory_space<vmem>>, vector<1x96xf32>
    %86 = vector.broadcast %85 : vector<1x96xf32> to vector<48x96xf32>
    %87 = arith.addf %84, %86 : vector<48x96xf32>
    %88 = vector.extract_strided_slice %87 {offsets = [0, 0], sizes = [48, 64], strides = [1, 1]} : vector<48x96xf32> to vector<48x64xf32>
    %cst_45 = arith.constant 0.000000e+00 : f32
    %89 = vector.broadcast %cst_45 : f32 to vector<48x64xf32>
    %90 = arith.maximumf %88, %89 : vector<48x64xf32>
    %91 = vector.extract_strided_slice %87 {offsets = [0, 64], sizes = [48, 32], strides = [1, 1]} : vector<48x96xf32> to vector<48x32xf32>
    %c1_46 = arith.constant 1 : index
    %c0_47 = arith.constant 0 : index
    %c0_48 = arith.constant 0 : index
    %92 = vector.load %arg4[%c1_46, %c0_47, %c0_48] : memref<3x64x32xf32, #tpu.memory_space<vmem>>, vector<1x64x32xf32>
    %93 = vector.shape_cast %92 : vector<1x64x32xf32> to vector<64x32xf32>
    %cst_49 = arith.constant dense<0.000000e+00> : vector<48x32xf32>
    %94 = tpu.matmul %90, %93, %cst_49 {dimension_numbers = #tpu.dot_dimension_numbers<[1], [0], [0], [1], [0, 0, 1, 1], [], []>} : vector<48x64xf32>, vector<64x32xf32>, vector<48x32xf32> -> vector<48x32xf32>
    %95 = arith.addf %91, %94 : vector<48x32xf32>
    %cst_50 = arith.constant 0.000000e+00 : f32
    %96 = vector.broadcast %cst_50 : f32 to vector<48x32xf32>
    %97 = arith.maximumf %95, %96 : vector<48x32xf32>
    %98 = arith.addf %97, %60 : vector<48x32xf32>
    %c2_i32_51 = arith.constant 2 : i32
    %99 = tpu.dynamic_rotate %98 by %c2_i32_51 dim 0 : vector<48x32xf32>, i32 -> vector<48x32xf32>
    %c2_i32_52 = arith.constant 2 : i32
    %100 = vector.broadcast %c2_i32_52 : i32 to vector<48x32xi32>
    %101 = arith.cmpi sge, %22, %100 : vector<48x32xi32>
    %cst_53 = arith.constant 0.000000e+00 : f32
    %102 = vector.broadcast %cst_53 : f32 to vector<48x32xf32>
    %103 = arith.select %101, %99, %102 : vector<48x32xi1>, vector<48x32xf32>
    %c1_i32_54 = arith.constant 1 : i32
    %104 = tpu.dynamic_rotate %98 by %c1_i32_54 dim 0 : vector<48x32xf32>, i32 -> vector<48x32xf32>
    %c1_i32_55 = arith.constant 1 : i32
    %105 = vector.broadcast %c1_i32_55 : i32 to vector<48x32xi32>
    %106 = arith.cmpi sge, %22, %105 : vector<48x32xi32>
    %cst_56 = arith.constant 0.000000e+00 : f32
    %107 = vector.broadcast %cst_56 : f32 to vector<48x32xf32>
    %108 = arith.select %106, %104, %107 : vector<48x32xi1>, vector<48x32xf32>
    %c8_i32_57 = arith.constant 8 : i32
    %109 = tpu.dynamic_rotate %98 by %c8_i32_57 dim 0 : vector<48x32xf32>, i32 -> vector<48x32xf32>
    %c8_i32_58 = arith.constant 8 : i32
    %110 = vector.broadcast %c8_i32_58 : i32 to vector<48x32xi32>
    %111 = arith.cmpi sge, %22, %110 : vector<48x32xi32>
    %cst_59 = arith.constant 0.000000e+00 : f32
    %112 = vector.broadcast %cst_59 : f32 to vector<48x32xf32>
    %113 = arith.select %111, %109, %112 : vector<48x32xi1>, vector<48x32xf32>
    %c4_i32_60 = arith.constant 4 : i32
    %114 = tpu.dynamic_rotate %98 by %c4_i32_60 dim 0 : vector<48x32xf32>, i32 -> vector<48x32xf32>
    %c4_i32_61 = arith.constant 4 : i32
    %115 = vector.broadcast %c4_i32_61 : i32 to vector<48x32xi32>
    %116 = arith.cmpi sge, %22, %115 : vector<48x32xi32>
    %cst_62 = arith.constant 0.000000e+00 : f32
    %117 = vector.broadcast %cst_62 : f32 to vector<48x32xf32>
    %118 = arith.select %116, %114, %117 : vector<48x32xi1>, vector<48x32xf32>
    %119 = tpu.concatenate %103, %108, %113, %118, %98 in 1 : vector<48x32xf32>, vector<48x32xf32>, vector<48x32xf32>, vector<48x32xf32>, vector<48x32xf32> -> vector<48x160xf32>
    %c2_63 = arith.constant 2 : index
    %c0_64 = arith.constant 0 : index
    %c0_65 = arith.constant 0 : index
    %120 = vector.load %arg3[%c2_63, %c0_64, %c0_65] : memref<3x160x96xf32, #tpu.memory_space<vmem>>, vector<1x160x96xf32>
    %121 = vector.shape_cast %120 : vector<1x160x96xf32> to vector<160x96xf32>
    %cst_66 = arith.constant dense<0.000000e+00> : vector<48x96xf32>
    %122 = tpu.matmul %119, %121, %cst_66 {dimension_numbers = #tpu.dot_dimension_numbers<[1], [0], [0], [1], [0, 0, 1, 1], [], []>} : vector<48x160xf32>, vector<160x96xf32>, vector<48x96xf32> -> vector<48x96xf32>
    %c3 = arith.constant 3 : index
    %c0_67 = arith.constant 0 : index
    %123 = vector.load %arg6[%c3, %c0_67] : memref<5x128xf32, #tpu.memory_space<vmem>>, vector<1x96xf32>
    %124 = vector.broadcast %123 : vector<1x96xf32> to vector<48x96xf32>
    %125 = arith.addf %122, %124 : vector<48x96xf32>
    %126 = vector.extract_strided_slice %125 {offsets = [0, 0], sizes = [48, 64], strides = [1, 1]} : vector<48x96xf32> to vector<48x64xf32>
    %cst_68 = arith.constant 0.000000e+00 : f32
    %127 = vector.broadcast %cst_68 : f32 to vector<48x64xf32>
    %128 = arith.maximumf %126, %127 : vector<48x64xf32>
    %129 = vector.extract_strided_slice %125 {offsets = [0, 64], sizes = [48, 32], strides = [1, 1]} : vector<48x96xf32> to vector<48x32xf32>
    %c2_69 = arith.constant 2 : index
    %c0_70 = arith.constant 0 : index
    %c0_71 = arith.constant 0 : index
    %130 = vector.load %arg4[%c2_69, %c0_70, %c0_71] : memref<3x64x32xf32, #tpu.memory_space<vmem>>, vector<1x64x32xf32>
    %131 = vector.shape_cast %130 : vector<1x64x32xf32> to vector<64x32xf32>
    %cst_72 = arith.constant dense<0.000000e+00> : vector<48x32xf32>
    %132 = tpu.matmul %128, %131, %cst_72 {dimension_numbers = #tpu.dot_dimension_numbers<[1], [0], [0], [1], [0, 0, 1, 1], [], []>} : vector<48x64xf32>, vector<64x32xf32>, vector<48x32xf32> -> vector<48x32xf32>
    %133 = arith.addf %129, %132 : vector<48x32xf32>
    %cst_73 = arith.constant 0.000000e+00 : f32
    %134 = vector.broadcast %cst_73 : f32 to vector<48x32xf32>
    %135 = arith.maximumf %133, %134 : vector<48x32xf32>
    %136 = arith.addf %135, %98 : vector<48x32xf32>
    %c0_74 = arith.constant 0 : index
    %c0_75 = arith.constant 0 : index
    %137 = vector.load %arg5[%c0_74, %c0_75] : memref<32x128xf32, #tpu.memory_space<vmem>>, vector<32x128xf32>
    %cst_76 = arith.constant dense<0.000000e+00> : vector<48x128xf32>
    %138 = tpu.matmul %136, %137, %cst_76 {dimension_numbers = #tpu.dot_dimension_numbers<[1], [0], [0], [1], [0, 0, 1, 1], [], []>} : vector<48x32xf32>, vector<32x128xf32>, vector<48x128xf32> -> vector<48x128xf32>
    %c4 = arith.constant 4 : index
    %c0_77 = arith.constant 0 : index
    %139 = vector.load %arg6[%c4, %c0_77] : memref<5x128xf32, #tpu.memory_space<vmem>>, vector<1x128xf32>
    %140 = vector.broadcast %139 : vector<1x128xf32> to vector<48x128xf32>
    %141 = arith.addf %138, %140 : vector<48x128xf32>
    %cst_78 = arith.constant 0.000000e+00 : f32
    %142 = vector.broadcast %cst_78 : f32 to vector<48x96xf32>
    %143 = tpu.concatenate %136, %142 in 1 : vector<48x32xf32>, vector<48x96xf32> -> vector<48x128xf32>
    %c0_79 = arith.constant 0 : index
    %c0_80 = arith.constant 0 : index
    %144 = vector.load %arg7[%c0_79, %c0_80] : memref<48x128xf32, #tpu.memory_space<vmem>>, vector<48x128xf32>
    tpu.vector_store %arg7[%c0_79, %c0_80], %143 {strides = array<i32>} : memref<48x128xf32, #tpu.memory_space<vmem>>, vector<48x128xf32>,
    %c0_81 = arith.constant 0 : index
    %c0_82 = arith.constant 0 : index
    %145 = vector.load %arg8[%c0_81, %c0_82] : memref<48x128xf32, #tpu.memory_space<vmem>>, vector<48x128xf32>
    tpu.vector_store %arg8[%c0_81, %c0_82], %141 {strides = array<i32>} : memref<48x128xf32, #tpu.memory_space<vmem>>, vector<48x128xf32>,
    return
  }
  func.func @transform_0(%arg0: i32) -> (i32, i32) {
    %c0_i32 = arith.constant 0 : i32
    %c0_i32_0 = arith.constant 0 : i32
    return %arg0, %c0_i32 : i32, i32
  }
  func.func @transform_1(%arg0: i32) -> (i32, i32) {
    %c0_i32 = arith.constant 0 : i32
    %c0_i32_0 = arith.constant 0 : i32
    %c0_i32_1 = arith.constant 0 : i32
    return %c0_i32, %c0_i32_0 : i32, i32
  }
  func.func @transform_2(%arg0: i32) -> (i32, i32, i32) {
    %c0_i32 = arith.constant 0 : i32
    %c0_i32_0 = arith.constant 0 : i32
    %c0_i32_1 = arith.constant 0 : i32
    %c0_i32_2 = arith.constant 0 : i32
    return %c0_i32, %c0_i32_0, %c0_i32_1 : i32, i32, i32
  }
  func.func @transform_3(%arg0: i32) -> (i32, i32, i32) {
    %c0_i32 = arith.constant 0 : i32
    %c0_i32_0 = arith.constant 0 : i32
    %c0_i32_1 = arith.constant 0 : i32
    %c0_i32_2 = arith.constant 0 : i32
    return %c0_i32, %c0_i32_0, %c0_i32_1 : i32, i32, i32
  }
  func.func @transform_4(%arg0: i32) -> (i32, i32) {
    %c0_i32 = arith.constant 0 : i32
    %c0_i32_0 = arith.constant 0 : i32
    %c0_i32_1 = arith.constant 0 : i32
    return %c0_i32, %c0_i32_0 : i32, i32
  }
  func.func @transform_5(%arg0: i32) -> (i32, i32) {
    %c0_i32 = arith.constant 0 : i32
    %c0_i32_0 = arith.constant 0 : i32
    %c0_i32_1 = arith.constant 0 : i32
    return %c0_i32, %c0_i32_0 : i32, i32
  }
  func.func @transform_6(%arg0: i32) -> (i32, i32) {
    %c0_i32 = arith.constant 0 : i32
    %c0_i32_0 = arith.constant 0 : i32
    return %arg0, %c0_i32 : i32, i32
  }
  func.func @transform_7(%arg0: i32) -> (i32, i32) {
    %c0_i32 = arith.constant 0 : i32
    %c0_i32_0 = arith.constant 0 : i32
    return %arg0, %c0_i32 : i32, i32
  }
}

</mosaic_0001>

<llo_original>
// kernel: prediction_generation_forward.1
$region0: #{prediction_generation_forward.1}
  #allocation0 [shape = 'u32[]', space=smem, size = 0x4, offset = 0x4, fixed_abs, tag = 'smem constant byte address 0x4 - core index']
  #allocation1 [shape = 'u32[144,128]{1,0:T(1,128)}', space=vmem, size = 0x12000, scoped, tag = 'internal scratch']
  %s0 = inlined_call_operand.vmem [shape: f32[48,16], index: 0, kind: input, shape index: {}]
  %s1 = inlined_call_operand.vmem [shape: f32[16,32], index: 1, kind: input, shape index: {}]
  %s2 = inlined_call_operand.hbm [shape: f32[3,160,96], index: 2, kind: input, shape index: {}]
  %s3 = inlined_call_operand.vmem [shape: f32[3,64,32], index: 3, kind: input, shape index: {}]
  %s4 = inlined_call_operand.vmem [shape: f32[32,128], index: 4, kind: input, shape index: {}]
  %s5 = inlined_call_operand.vmem [shape: f32[5,128], index: 5, kind: input, shape index: {}]
  %s6 = inlined_call_operand.hbm [shape: f32[48,128], index: 6, kind: output, shape index: {0}]
  %s7 = inlined_call_operand.vmem [shape: f32[48,128], index: 7, kind: output, shape index: {1}]
  %8 = xla_tuple %s6, %s7
  %s9 = sld [smem:[#allocation0]]
  $region46: #{prediction_generation_forward.1} parent=0
    _
  %s11 = ssub.s32 1, %s9
  %s12 = scalar_select 0, %s11, %s9
  $region1: #{prediction_generation_forward.1} parent=0
    #allocation2 [shape = 'u8[245760]{0}', space=vmem, size = 0x3c000, scoped, tag = 'input window, operand 2, single buffered']
    #allocation3 [shape = 's32[1]{0}', space=sflag, size = 0x4, scoped, tag = 'scoped memory for prediction_generation_forward.1']
    #allocation4 [shape = 's32[1]{0}', space=sflag, size = 0x4, scoped, tag = 'scoped memory for prediction_generation_forward.1']
    #allocation5 [shape = 'u8[24576]{0}', space=vmem, size = 0x6000, scoped, tag = 'output window, operand 0, single buffered']
    %13 = vsyncpa [#allocation3], 0
    %14 = vsyncpa [#allocation4], 0
    // Predicated region
    $region2: #{prediction_generation_forward.1} parent=1 // pred_check
      _
    $region3: #{prediction_generation_forward.1} parent=1 // pred_check_branch
      %16 = sbr.rel (0) target = $region5
    $region4: #{prediction_generation_forward.1} parent=1 // pred_region
      _
    $region5: #{prediction_generation_forward.1} parent=1 // pred_fallthru
      _
    // Predicated region
    $region6: #{prediction_generation_forward.1} parent=1 // pred_check
      _
    $region7: #{prediction_generation_forward.1} parent=1 // pred_check_branch
      %18 = sbr.rel (0) target = $region9
    $region8: #{prediction_generation_forward.1} parent=1 // pred_region
      _
    $region9: #{prediction_generation_forward.1} parent=1 // pred_fallthru
      _
    // Predicated region
    $region10: #{prediction_generation_forward.1} parent=1 // pred_check
      _
    $region11: #{prediction_generation_forward.1} parent=1 // pred_check_branch
      %20 = sbr.rel (0) target = $region13
    $region12: #{prediction_generation_forward.1} parent=1 // pred_region
      %s22 = ssub.s32 7680, 7680
      %23 = vsyncadd [#allocation3], %s22
      %s24 = sshll.u32 [#allocation2], 4
      %s25 = int_to_ptr.vmem [resolvable:$true] %s24
      %30 = dma.hbm_to_vmem [thread:$0]  %s2, 7680, %s25, [#allocation3], 128, 128, 8
    $region13: #{prediction_generation_forward.1} parent=1 // pred_fallthru
      _
    // Predicated region
    $region14: #{prediction_generation_forward.1} parent=1 // pred_check
      _
    $region15: #{prediction_generation_forward.1} parent=1 // pred_check_branch
      %32 = sbr.rel (0) target = $region17
    $region16: #{prediction_generation_forward.1} parent=1 // pred_region
      _
    $region17: #{prediction_generation_forward.1} parent=1 // pred_fallthru
      _
    // Predicated region
    $region18: #{prediction_generation_forward.1} parent=1 // pred_check
      _
    $region19: #{prediction_generation_forward.1} parent=1 // pred_check_branch
      %34 = sbr.rel (0) target = $region21
    $region20: #{prediction_generation_forward.1} parent=1 // pred_region
      _
    $region21: #{prediction_generation_forward.1} parent=1 // pred_fallthru
      _
    // Predicated region
    $region22: #{prediction_generation_forward.1} parent=1 // pred_check
      _
    $region23: #{prediction_generation_forward.1} parent=1 // pred_check_branch
      %36 = sbr.rel (0) target = $region25
    $region24: #{prediction_generation_forward.1} parent=1 // pred_region
      _
    $region25: #{prediction_generation_forward.1} parent=1 // pred_fallthru
      _
    // Predicated region
    $region26: #{prediction_generation_forward.1} parent=1 // pred_check
      _
    $region27: #{prediction_generation_forward.1} parent=1 // pred_check_branch
      %38 = sbr.rel (0) target = $region29
    $region28: #{prediction_generation_forward.1} parent=1 // pred_region
      %39 = dma.done [#allocation3], 7680
    $region29: #{prediction_generation_forward.1} parent=1 // pred_fallthru
      _
    %v40 = vld [vmem:[%s0] sm:$0xff]
    %v41 = vld [vmem:[%s0 + $0x8] sm:$0xff]
    %v42 = vld [vmem:[%s0 + $0x10] sm:$0xff]
    %v43 = vld [vmem:[%s0 + $0x18] sm:$0xff]
    %v44 = vld [vmem:[%s0 + $0x20] sm:$0xff]
    %v45 = vld [vmem:[%s0 + $0x28] sm:$0xff]
    %v46 = vld [vmem:[%s1] sm:$0xff]
    %v47 = vld [vmem:[%s1 + $0x8] sm:$0xff]
    %v48 = vld [vmem:[%s5] sm:$0x1]
    %v49 = vlaneseq
    %v50 = vshrl.u32 %v49, 7
    %v51 = vsub.s32 0, %v50
    %v52 = vrot.slane %v48, %v51
    %vm53 = vcmask 130048
    %v55 = vsel %vm53, %v40, 0
    %v58 = vsel %vm53, %v41, 0
    %v61 = vsel %vm53, %v42, 0
    %v64 = vsel %vm53, %v43, 0
    %v67 = vsel %vm53, %v44, 0
    %v70 = vsel %vm53, %v45, 0
    %72 = vmatprep.subr.mxu0 0.0
    %73 = vmatpush1.msra.mxu0 %v46
    %74 = vmatprep.subr.mxu0 0.0
    %75 = vmatpush1.msra.mxu0 %v47
    %76 = vmatprep.subr.mxu0 0.0
    %77 = vmatpush1.msra.mxu0 0.0
    %78 = vmatprep.subr.mxu0 0.0
    %79 = vmatpush1.msra.mxu0 0.0
    %80 = vmatprep.subr.mxu0 0.0
    %81 = vmatpush1.msra.mxu0 0.0
    %82 = vmatprep.subr.mxu0 0.0
    %83 = vmatpush1.msra.mxu0 0.0
    %84 = vmatprep.subr.mxu0 0.0
    %85 = vmatpush1.msra.mxu0 0.0
    %86 = vmatprep.subr.mxu0 0.0
    %87 = vmatpush1.msra.mxu0 0.0
    %88 = vmatprep.subr.mxu0 0.0
    %89 = vmatpush1.msra.mxu0 0.0
    %90 = vmatprep.subr.mxu0 0.0
    %91 = vmatpush1.msra.mxu0 0.0
    %92 = vmatprep.subr.mxu0 0.0
    %93 = vmatpush1.msra.mxu0 0.0
    %94 = vmatprep.subr.mxu0 0.0
    %95 = vmatpush1.msra.mxu0 0.0
    %96 = vmatprep.subr.mxu0 0.0
    %97 = vmatpush1.msra.mxu0 0.0
    %98 = vmatprep.subr.mxu0 0.0
    %99 = vmatpush1.msra.mxu0 0.0
    %100 = vmatprep.subr.mxu0 0.0
    %101 = vmatpush1.msra.mxu0 0.0
    %102 = vmatprep.subr.mxu0 0.0
    %103 = vmatpush1.msra.mxu0 0.0
    %104 = vmatprep.subr.mxu0 0.0
    %105 = vmatpush1.msra.mxu0 0.0
    %106 = vmatprep.subr.mxu0 0.0
    %107 = vmatpush1.msra.mxu0 0.0
    %108 = vmatprep.subr.mxu0 0.0
    %109 = vmatpush1.msra.mxu0 0.0
    %110 = vmatprep.subr.mxu0 0.0
    %111 = vmatpush1.msra.mxu0 0.0
    %112 = vmatprep.subr.mxu0 0.0
    %113 = vmatpush1.msra.mxu0 0.0
    %114 = vmatprep.subr.mxu0 0.0
    %115 = vmatpush1.msra.mxu0 0.0
    %116 = vmatprep.subr.mxu0 0.0
    %117 = vmatpush1.msra.mxu0 0.0
    %118 = vmatprep.subr.mxu0 0.0
    %119 = vmatpush1.msra.mxu0 0.0
    %120 = vmatprep.subr.mxu0 0.0
    %121 = vmatpush1.msra.mxu0 0.0
    %122 = vmatprep.subr.mxu0 0.0
    %123 = vmatpush1.msra.mxu0 0.0
    %124 = vmatprep.subr.mxu0 0.0
    %125 = vmatpush1.msra.mxu0 0.0
    %126 = vmatprep.subr.mxu0 0.0
    %127 = vmatpush1.msra.mxu0 0.0
    %128 = vmatprep.subr.mxu0 0.0
    %129 = vmatpush1.msra.mxu0 0.0
    %130 = vmatprep.subr.mxu0 0.0
    %131 = vmatpush1.msra.mxu0 0.0
    %132 = vmatprep.subr.mxu0 0.0
    %133 = vmatpush1.msra.mxu0 0.0
    %134 = vmatprep.subr.mxu0 0.0
    %135 = vmatpush1.msra.mxu0 0.0
    %136 = vmatprep.mubr.f32.mxu0 0.0
    %137 = vmatmul.mubr.f32.gmra.mrb[0].mxu0 %v55
    %v138 = vpop.f32.mrb[0].mxu0
    %v139 = vadd.f32 %v52, %v138
    %v140 = vpop.f32.mrb[0].mxu0
    %141 = vmatprep.mubr.f32.mxu0 0.0
    %142 = vmatmul.mubr.f32.gmra.mrb[0].mxu0 %v58
    %v143 = vpop.f32.mrb[0].mxu0
    %v144 = vadd.f32 %v52, %v143
    %v145 = vpop.f32.mrb[0].mxu0
    %146 = vmatprep.mubr.f32.mxu0 0.0
    %147 = vmatmul.mubr.f32.gmra.mrb[0].mxu0 %v61
    %v148 = vpop.f32.mrb[0].mxu0
    %v149 = vadd.f32 %v52, %v148
    %v150 = vpop.f32.mrb[0].mxu0
    %151 = vmatprep.mubr.f32.mxu0 0.0
    %152 = vmatmul.mubr.f32.gmra.mrb[0].mxu0 %v64
    %v153 = vpop.f32.mrb[0].mxu0
    %v154 = vadd.f32 %v52, %v153
    %v155 = vpop.f32.mrb[0].mxu0
    %156 = vmatprep.mubr.f32.mxu0 0.0
    %157 = vmatmul.mubr.f32.gmra.mrb[0].mxu0 %v67
    %v158 = vpop.f32.mrb[0].mxu0
    %v159 = vadd.f32 %v52, %v158
    %v160 = vpop.f32.mrb[0].mxu0
    %161 = vmatprep.mubr.f32.mxu0 0.0
    %162 = vmatmul.mubr.f32.gmra.mrb[0].mxu0 %v70
    %v163 = vpop.f32.mrb[0].mxu0
    %v164 = vadd.f32 %v52, %v163
    %v165 = vpop.f32.mrb[0].mxu0
    %166 = vdwg.mxu0
    %v167 = vlaneseq
    %v168 = vshrl.u32 %v167, 7
    %v169 = vadd.s32 %v168, 8
    %v170 = vadd.s32 %v168, 16
    %v171 = vadd.s32 %v168, 24
    %v172 = vadd.s32 %v168, 32
    %v173 = vadd.s32 %v168, 40
    %vm174 = vcmp.lt.s32.totalorder %v168, 0
    %v175 = vsub.s32 0, %v168
    %v176 = vsel %vm174, %v175, %v168
    %v177 = vmul.u32.u64.compose %v176, 2863311531
    %v178 = vextract.low.u32 %v177
    %v179 = vextract.high.u32 %v177
    %v180 = vshrl.u32 %v179, 4
    %v181 = vmul.u32 %v180, 24
    %v182 = vsub.s32 %v176, %v181
    %v183 = vsub.s32 0, %v182
    %v184 = vsel %vm174, %v183, %v182
    %vm185 = vcmp.lt.s32.totalorder %v169, 0
    %v186 = vsub.s32 0, %v169
    %v187 = vsel %vm185, %v186, %v169
    %v188 = vmul.u32.u64.compose %v187, 2863311531
    %v189 = vextract.low.u32 %v188
    %v190 = vextract.high.u32 %v188
    %v191 = vshrl.u32 %v190, 4
    %v192 = vmul.u32 %v191, 24
    %v193 = vsub.s32 %v187, %v192
    %v194 = vsub.s32 0, %v193
    %v195 = vsel %vm185, %v194, %v193
    %vm196 = vcmp.lt.s32.totalorder %v170, 0
    %v197 = vsub.s32 0, %v170
    %v198 = vsel %vm196, %v197, %v170
    %v199 = vmul.u32.u64.compose %v198, 2863311531
    %v200 = vextract.low.u32 %v199
    %v201 = vextract.high.u32 %v199
    %v202 = vshrl.u32 %v201, 4
    %v203 = vmul.u32 %v202, 24
    %v204 = vsub.s32 %v198, %v203
    %v205 = vsub.s32 0, %v204
    %v206 = vsel %vm196, %v205, %v204
    %vm207 = vcmp.lt.s32.totalorder %v171, 0
    %v208 = vsub.s32 0, %v171
    %v209 = vsel %vm207, %v208, %v171
    %v210 = vmul.u32.u64.compose %v209, 2863311531
    %v211 = vextract.low.u32 %v210
    %v212 = vextract.high.u32 %v210
    %v213 = vshrl.u32 %v212, 4
    %v214 = vmul.u32 %v213, 24
    %v215 = vsub.s32 %v209, %v214
    %v216 = vsub.s32 0, %v215
    %v217 = vsel %vm207, %v216, %v215
    %vm218 = vcmp.lt.s32.totalorder %v172, 0
    %v219 = vsub.s32 0, %v172
    %v220 = vsel %vm218, %v219, %v172
    %v221 = vmul.u32.u64.compose %v220, 2863311531
    %v222 = vextract.low.u32 %v221
    %v223 = vextract.high.u32 %v221
    %v224 = vshrl.u32 %v223, 4
    %v225 = vmul.u32 %v224, 24
    %v226 = vsub.s32 %v220, %v225
    %v227 = vsub.s32 0, %v226
    %v228 = vsel %vm218, %v227, %v226
    %vm229 = vcmp.lt.s32.totalorder %v173, 0
    %v230 = vsub.s32 0, %v173
    %v231 = vsel %vm229, %v230, %v173
    %v232 = vmul.u32.u64.compose %v231, 2863311531
    %v233 = vextract.low.u32 %v232
    %v234 = vextract.high.u32 %v232
    %v235 = vshrl.u32 %v234, 4
    %v236 = vmul.u32 %v235, 24
    %v237 = vsub.s32 %v231, %v236
    %v238 = vsub.s32 0, %v237
    %v239 = vsel %vm229, %v238, %v237
    %vm240 = vcmp.ne.s32.totalorder %v184, 0
    %vm241 = vcmp.ne.s32.totalorder %v195, 0
    %vm242 = vcmp.ne.s32.totalorder %v206, 0
    %vm243 = vcmp.ne.s32.totalorder %v217, 0
    %vm244 = vcmp.ne.s32.totalorder %v228, 0
    %vm245 = vcmp.ne.s32.totalorder %v239, 0
    %vm246 = vcmp.lt.s32.totalorder %v184, 0
    %vm247 = vcmp.lt.s32.totalorder %v195, 0
    %vm248 = vcmp.lt.s32.totalorder %v206, 0
    %vm249 = vcmp.lt.s32.totalorder %v217, 0
    %vm250 = vcmp.lt.s32.totalorder %v228, 0
    %vm251 = vcmp.lt.s32.totalorder %v239, 0
    %vm252 = vmand %vm246, %vm240
    %vm253 = vmand %vm247, %vm241
    %vm254 = vmand %vm248, %vm242
    %vm255 = vmand %vm249, %vm243
    %vm256 = vmand %vm250, %vm244
    %vm257 = vmand %vm251, %vm245
    %v258 = vadd.s32 %v184, 24
    %v259 = vadd.s32 %v195, 24
    %v260 = vadd.s32 %v206, 24
    %v261 = vadd.s32 %v217, 24
    %v262 = vadd.s32 %v228, 24
    %v263 = vadd.s32 %v239, 24
    %v264 = vsel %vm252, %v258, %v184
    %v265 = vsel %vm253, %v259, %v195
    %v266 = vsel %vm254, %v260, %v206
    %v267 = vsel %vm255, %v261, %v217
    %v268 = vsel %vm256, %v262, %v228
    %v269 = vsel %vm257, %v263, %v239
    %vm270 = vcmp.ge.s32.totalorder %v264, 8
    %vm271 = vcmp.ge.s32.totalorder %v265, 8
    %vm272 = vcmp.ge.s32.totalorder %v266, 8
    %vm273 = vcmp.ge.s32.totalorder %v267, 8
    %vm274 = vcmp.ge.s32.totalorder %v268, 8
    %vm275 = vcmp.ge.s32.totalorder %v269, 8
    %v276 = vsel %vm270, %v164, 0.0
    %v277 = vsel %vm271, %v139, 0.0
    %v278 = vsel %vm272, %v144, 0.0
    %v279 = vsel %vm273, %v149, 0.0
    %v280 = vsel %vm274, %v154, 0.0
    %v281 = vsel %vm275, %v159, 0.0
    %v282 = vrot.slane %v139, 4
    %v283 = vrot.slane %v144, 4
    %v284 = vrot.slane %v149, 4
    %v285 = vrot.slane %v154, 4
    %v286 = vrot.slane %v159, 4
    %v287 = vrot.slane %v164, 4
    %vm288 = vcmp.lt.s32.totalorder %v168, 4
    %v289 = vsel %vm288, %v286, %v287
    %v290 = vsel %vm288, %v285, %v286
    %v291 = vsel %vm288, %v284, %v285
    %v292 = vsel %vm288, %v283, %v284
    %v293 = vsel %vm288, %v282, %v283
    %v294 = vsel %vm288, %v287, %v282
    %vm295 = vcmp.ge.s32.totalorder %v264, 4
    %vm296 = vcmp.ge.s32.totalorder %v265, 4
    %vm297 = vcmp.ge.s32.totalorder %v266, 4
    %vm298 = vcmp.ge.s32.totalorder %v267, 4
    %vm299 = vcmp.ge.s32.totalorder %v268, 4
    %vm300 = vcmp.ge.s32.totalorder %v269, 4
    %v301 = vsel %vm295, %v294, 0.0
    %v302 = vsel %vm296, %v293, 0.0
    %v303 = vsel %vm297, %v292, 0.0
    %v304 = vsel %vm298, %v291, 0.0
    %v305 = vsel %vm299, %v290, 0.0
    %v306 = vsel %vm300, %v289, 0.0
    %v307 = vrot.slane %v139, 6
    %v308 = vrot.slane %v144, 6
    %v309 = vrot.slane %v149, 6
    %v310 = vrot.slane %v154, 6
    %v311 = vrot.slane %v159, 6
    %v312 = vrot.slane %v164, 6
    %vm313 = vcmp.lt.s32.totalorder %v168, 2
    %v314 = vsel %vm313, %v311, %v312
    %v315 = vsel %vm313, %v310, %v311
    %v316 = vsel %vm313, %v309, %v310
    %v317 = vsel %vm313, %v308, %v309
    %v318 = vsel %vm313, %v307, %v308
    %v319 = vsel %vm313, %v312, %v307
    %vm320 = vcmp.ge.s32.totalorder %v264, 2
    %vm321 = vcmp.ge.s32.totalorder %v265, 2
    %vm322 = vcmp.ge.s32.totalorder %v266, 2
    %vm323 = vcmp.ge.s32.totalorder %v267, 2
    %vm324 = vcmp.ge.s32.totalorder %v268, 2
    %vm325 = vcmp.ge.s32.totalorder %v269, 2
    %v326 = vsel %vm320, %v319, 0.0
    %v327 = vsel %vm321, %v318, 0.0
    %v328 = vsel %vm322, %v317, 0.0
    %v329 = vsel %vm323, %v316, 0.0
    %v330 = vsel %vm324, %v315, 0.0
    %v331 = vsel %vm325, %v314, 0.0
    %v332 = vrot.slane %v139, 7
    %v333 = vrot.slane %v144, 7
    %v334 = vrot.slane %v149, 7
    %v335 = vrot.slane %v154, 7
    %v336 = vrot.slane %v159, 7
    %v337 = vrot.slane %v164, 7
    %vm338 = vcmp.lt.s32.totalorder %v168, 1
    %v339 = vsel %vm338, %v336, %v337
    %v340 = vsel %vm338, %v335, %v336
    %v341 = vsel %vm338, %v334, %v335
    %v342 = vsel %vm338, %v333, %v334
    %v343 = vsel %vm338, %v332, %v333
    %v344 = vsel %vm338, %v337, %v332
    %vm345 = vcmp.ge.s32.totalorder %v264, 1
    %vm346 = vcmp.ge.s32.totalorder %v265, 1
    %vm347 = vcmp.ge.s32.totalorder %v266, 1
    %vm348 = vcmp.ge.s32.totalorder %v267, 1
    %vm349 = vcmp.ge.s32.totalorder %v268, 1
    %vm350 = vcmp.ge.s32.totalorder %v269, 1
    %v351 = vsel %vm345, %v344, 0.0
    %v352 = vsel %vm346, %v343, 0.0
    %v353 = vsel %vm347, %v342, 0.0
    %v354 = vsel %vm348, %v341, 0.0
    %v355 = vsel %vm349, %v340, 0.0
    %v356 = vsel %vm350, %v339, 0.0
    %363 = vrot.lane.b32.xlu0 %v301, 32
    %v364 = vpop.permute.xlu0 %363
    %365 = vrot.lane.b32.xlu0 %v302, 32
    %v366 = vpop.permute.xlu0 %365
    %367 = vrot.lane.b32.xlu0 %v303, 32
    %v368 = vpop.permute.xlu0 %367
    %369 = vrot.lane.b32.xlu0 %v304, 32
    %v370 = vpop.permute.xlu0 %369
    %371 = vrot.lane.b32.xlu0 %v305, 32
    %v372 = vpop.permute.xlu0 %371
    %373 = vrot.lane.b32.xlu0 %v306, 32
    %v374 = vpop.permute.xlu0 %373
    %387 = vrot.lane.b32.xlu0 %v326, 64
    %v388 = vpop.permute.xlu0 %387
    %389 = vrot.lane.b32.xlu0 %v327, 64
    %v390 = vpop.permute.xlu0 %389
    %391 = vrot.lane.b32.xlu0 %v328, 64
    %v392 = vpop.permute.xlu0 %391
    %393 = vrot.lane.b32.xlu0 %v329, 64
    %v394 = vpop.permute.xlu0 %393
    %395 = vrot.lane.b32.xlu0 %v330, 64
    %v396 = vpop.permute.xlu0 %395
    %397 = vrot.lane.b32.xlu0 %v331, 64
    %v398 = vpop.permute.xlu0 %397
    %411 = vrot.lane.b32.xlu0 %v351, 96
    %v412 = vpop.permute.xlu0 %411
    %413 = vrot.lane.b32.xlu0 %v352, 96
    %v414 = vpop.permute.xlu0 %413
    %415 = vrot.lane.b32.xlu0 %v353, 96
    %v416 = vpop.permute.xlu0 %415
    %417 = vrot.lane.b32.xlu0 %v354, 96
    %v418 = vpop.permute.xlu0 %417
    %419 = vrot.lane.b32.xlu0 %v355, 96
    %v420 = vpop.permute.xlu0 %419
    %421 = vrot.lane.b32.xlu0 %v356, 96
    %v422 = vpop.permute.xlu0 %421
    %vm429 = vcmask 261120
    %v430 = vsel %vm429, %v276, %v364
    %v431 = vsel %vm429, %v277, %v366
    %v432 = vsel %vm429, %v278, %v368
    %v433 = vsel %vm429, %v279, %v370
    %v434 = vsel %vm429, %v280, %v372
    %v435 = vsel %vm429, %v281, %v374
    %vm436 = vcmask 523264
    %v437 = vsel %vm436, %v430, %v388
    %v438 = vsel %vm436, %v431, %v390
    %v439 = vsel %vm436, %v432, %v392
    %v440 = vsel %vm436, %v433, %v394
    %v441 = vsel %vm436, %v434, %v396
    %v442 = vsel %vm436, %v435, %v398
    %vm443 = vcmask 785408
    %v444 = vsel %vm443, %v437, %v412
    %v445 = vsel %vm443, %v438, %v414
    %v446 = vsel %vm443, %v439, %v416
    %v447 = vsel %vm443, %v440, %v418
    %v448 = vsel %vm443, %v441, %v420
    %v449 = vsel %vm443, %v442, %v422
    %v450 = vld [vmem:[#allocation2] sm:$0xff]
    %v451 = vld [vmem:[#allocation2 + $0x8] sm:$0xff]
    %v452 = vld [vmem:[#allocation2 + $0x10] sm:$0xff]
    %v453 = vld [vmem:[#allocation2 + $0x18] sm:$0xff]
    %v454 = vld [vmem:[#allocation2 + $0x20] sm:$0xff]
    %v455 = vld [vmem:[#allocation2 + $0x28] sm:$0xff]
    %v456 = vld [vmem:[#allocation2 + $0x30] sm:$0xff]
    %v457 = vld [vmem:[#allocation2 + $0x38] sm:$0xff]
    %v458 = vld [vmem:[#allocation2 + $0x40] sm:$0xff]
    %v459 = vld [vmem:[#allocation2 + $0x48] sm:$0xff]
    %v460 = vld [vmem:[#allocation2 + $0x50] sm:$0xff]
    %v461 = vld [vmem:[#allocation2 + $0x58] sm:$0xff]
    %v462 = vld [vmem:[#allocation2 + $0x60] sm:$0xff]
    %v463 = vld [vmem:[#allocation2 + $0x68] sm:$0xff]
    %v464 = vld [vmem:[#allocation2 + $0x70] sm:$0xff]
    %v465 = vld [vmem:[#allocation2 + $0x78] sm:$0xff]
    %v466 = vld [vmem:[#allocation2 + $0x80] sm:$0xff]
    %v467 = vld [vmem:[#allocation2 + $0x88] sm:$0xff]
    %v468 = vld [vmem:[#allocation2 + $0x90] sm:$0xff]
    %v469 = vld [vmem:[#allocation2 + $0x98] sm:$0xff]
    %v470 = vld [vmem:[%s5 + $0x1] sm:$0x1]
    %v471 = vlaneseq
    %v472 = vshrl.u32 %v471, 7
    %v473 = vsub.s32 0, %v472
    %v474 = vrot.slane %v470, %v473
    %v476 = vsel %vm429, %v139, 0
    %v479 = vsel %vm429, %v144, 0
    %v482 = vsel %vm429, %v149, 0
    %v485 = vsel %vm429, %v154, 0
    %v488 = vsel %vm429, %v159, 0
    %v491 = vsel %vm429, %v164, 0
    %493 = vmatprep.subr.mxu0 0.0
    %494 = vmatpush1.msra.mxu0 %v450
    %495 = vmatprep.subr.mxu0 0.0
    %496 = vmatpush1.msra.mxu0 %v451
    %497 = vmatprep.subr.mxu0 0.0
    %498 = vmatpush1.msra.mxu0 %v452
    %499 = vmatprep.subr.mxu0 0.0
    %500 = vmatpush1.msra.mxu0 %v453
    %501 = vmatprep.subr.mxu0 0.0
    %502 = vmatpush1.msra.mxu0 %v454
    %503 = vmatprep.subr.mxu0 0.0
    %504 = vmatpush1.msra.mxu0 %v455
    %505 = vmatprep.subr.mxu0 0.0
    %506 = vmatpush1.msra.mxu0 %v456
    %507 = vmatprep.subr.mxu0 0.0
    %508 = vmatpush1.msra.mxu0 %v457
    %509 = vmatprep.subr.mxu0 0.0
    %510 = vmatpush1.msra.mxu0 %v458
    %511 = vmatprep.subr.mxu0 0.0
    %512 = vmatpush1.msra.mxu0 %v459
    %513 = vmatprep.subr.mxu0 0.0
    %514 = vmatpush1.msra.mxu0 %v460
    %515 = vmatprep.subr.mxu0 0.0
    %516 = vmatpush1.msra.mxu0 %v461
    %517 = vmatprep.subr.mxu0 0.0
    %518 = vmatpush1.msra.mxu0 %v462
    %519 = vmatprep.subr.mxu0 0.0
    %520 = vmatpush1.msra.mxu0 %v463
    %521 = vmatprep.subr.mxu0 0.0
    %522 = vmatpush1.msra.mxu0 %v464
    %523 = vmatprep.subr.mxu0 0.0
    %524 = vmatpush1.msra.mxu0 %v465
    %525 = vmatprep.subr.mxu0 0.0
    %526 = vmatpush1.msra.mxu0 %v466
    %527 = vmatprep.subr.mxu0 0.0
    %528 = vmatpush1.msra.mxu0 %v467
    %529 = vmatprep.subr.mxu0 0.0
    %530 = vmatpush1.msra.mxu0 %v468
    %531 = vmatprep.subr.mxu0 0.0
    %532 = vmatpush1.msra.mxu0 %v469
    %533 = vmatprep.subr.mxu0 0.0
    %534 = vmatpush1.msra.mxu0 0.0
    %535 = vmatprep.subr.mxu0 0.0
    %536 = vmatpush1.msra.mxu0 0.0
    %537 = vmatprep.subr.mxu0 0.0
    %538 = vmatpush1.msra.mxu0 0.0
    %539 = vmatprep.subr.mxu0 0.0
    %540 = vmatpush1.msra.mxu0 0.0
    %541 = vmatprep.subr.mxu0 0.0
    %542 = vmatpush1.msra.mxu0 0.0
    %543 = vmatprep.subr.mxu0 0.0
    %544 = vmatpush1.msra.mxu0 0.0
    %545 = vmatprep.subr.mxu0 0.0
    %546 = vmatpush1.msra.mxu0 0.0
    %547 = vmatprep.subr.mxu0 0.0
    %548 = vmatpush1.msra.mxu0 0.0
    %549 = vmatprep.subr.mxu0 0.0
    %550 = vmatpush1.msra.mxu0 0.0
    %551 = vmatprep.subr.mxu0 0.0
    %552 = vmatpush1.msra.mxu0 0.0
    %553 = vmatprep.subr.mxu0 0.0
    %554 = vmatpush1.msra.mxu0 0.0
    %555 = vmatprep.subr.mxu0 0.0
    %556 = vmatpush1.msra.mxu0 0.0
    %557 = vmatprep.mubr.f32.mxu0 %v476
    %558 = vmatmul.mubr.f32.gmra.mrb[0].mxu0 %v444
    %v559 = vpop.f32.mrb[0].mxu0
    %v560 = vadd.f32 %v474, %v559
    %v561 = vpop.f32.mrb[0].mxu0
    %562 = vmatprep.mubr.f32.mxu0 %v479
    %563 = vmatmul.mubr.f32.gmra.mrb[0].mxu0 %v445
    %v564 = vpop.f32.mrb[0].mxu0
    %v565 = vadd.f32 %v474, %v564
    %v566 = vpop.f32.mrb[0].mxu0
    %567 = vmatprep.mubr.f32.mxu0 %v482
    %568 = vmatmul.mubr.f32.gmra.mrb[0].mxu0 %v446
    %v569 = vpop.f32.mrb[0].mxu0
    %v570 = vadd.f32 %v474, %v569
    %v571 = vpop.f32.mrb[0].mxu0
    %572 = vmatprep.mubr.f32.mxu0 %v485
    %573 = vmatmul.mubr.f32.gmra.mrb[0].mxu0 %v447
    %v574 = vpop.f32.mrb[0].mxu0
    %v575 = vadd.f32 %v474, %v574
    %v576 = vpop.f32.mrb[0].mxu0
    %577 = vmatprep.mubr.f32.mxu0 %v488
    %578 = vmatmul.mubr.f32.gmra.mrb[0].mxu0 %v448
    %v579 = vpop.f32.mrb[0].mxu0
    %v580 = vadd.f32 %v474, %v579
    %v581 = vpop.f32.mrb[0].mxu0
    %582 = vmatprep.mubr.f32.mxu0 %v491
    %583 = vmatmul.mubr.f32.gmra.mrb[0].mxu0 %v449
    %v584 = vpop.f32.mrb[0].mxu0
    %v585 = vadd.f32 %v474, %v584
    %v586 = vpop.f32.mrb[0].mxu0
    %587 = vdwg.mxu0
    %v588 = vmax.f32 %v560, 0.0
    %v589 = vmax.f32 %v565, 0.0
    %v590 = vmax.f32 %v570, 0.0
    %v591 = vmax.f32 %v575, 0.0
    %v592 = vmax.f32 %v580, 0.0
    %v593 = vmax.f32 %v585, 0.0
    %v594 = vld [vmem:[%s3] sm:$0xff]
    %v595 = vld [vmem:[%s3 + $0x8] sm:$0xff]
    %v596 = vld [vmem:[%s3 + $0x10] sm:$0xff]
    %v597 = vld [vmem:[%s3 + $0x18] sm:$0xff]
    %v598 = vld [vmem:[%s3 + $0x20] sm:$0xff]
    %v599 = vld [vmem:[%s3 + $0x28] sm:$0xff]
    %v600 = vld [vmem:[%s3 + $0x30] sm:$0xff]
    %v601 = vld [vmem:[%s3 + $0x38] sm:$0xff]
    %v603 = vsel %vm436, %v588, 0
    %v606 = vsel %vm436, %v589, 0
    %v609 = vsel %vm436, %v590, 0
    %v612 = vsel %vm436, %v591, 0
    %v615 = vsel %vm436, %v592, 0
    %v618 = vsel %vm436, %v593, 0
    %620 = vmatprep.subr.mxu0 0.0
    %621 = vmatpush1.msra.mxu0 %v594
    %622 = vmatprep.subr.mxu0 0.0
    %623 = vmatpush1.msra.mxu0 %v595
    %624 = vmatprep.subr.mxu0 0.0
    %625 = vmatpush1.msra.mxu0 %v596
    %626 = vmatprep.subr.mxu0 0.0
    %627 = vmatpush1.msra.mxu0 %v597
    %628 = vmatprep.subr.mxu0 0.0
    %629 = vmatpush1.msra.mxu0 %v598
    %630 = vmatprep.subr.mxu0 0.0
    %631 = vmatpush1.msra.mxu0 %v599
    %632 = vmatprep.subr.mxu0 0.0
    %633 = vmatpush1.msra.mxu0 %v600
    %634 = vmatprep.subr.mxu0 0.0
    %635 = vmatpush1.msra.mxu0 %v601
    %636 = vmatprep.subr.mxu0 0.0
    %637 = vmatpush1.msra.mxu0 0.0
    %638 = vmatprep.subr.mxu0 0.0
    %639 = vmatpush1.msra.mxu0 0.0
    %640 = vmatprep.subr.mxu0 0.0
    %641 = vmatpush1.msra.mxu0 0.0
    %642 = vmatprep.subr.mxu0 0.0
    %643 = vmatpush1.msra.mxu0 0.0
    %644 = vmatprep.subr.mxu0 0.0
    %645 = vmatpush1.msra.mxu0 0.0
    %646 = vmatprep.subr.mxu0 0.0
    %647 = vmatpush1.msra.mxu0 0.0
    %648 = vmatprep.subr.mxu0 0.0
    %649 = vmatpush1.msra.mxu0 0.0
    %650 = vmatprep.subr.mxu0 0.0
    %651 = vmatpush1.msra.mxu0 0.0
    %652 = vmatprep.subr.mxu0 0.0
    %653 = vmatpush1.msra.mxu0 0.0
    %654 = vmatprep.subr.mxu0 0.0
    %655 = vmatpush1.msra.mxu0 0.0
    %656 = vmatprep.subr.mxu0 0.0
    %657 = vmatpush1.msra.mxu0 0.0
    %658 = vmatprep.subr.mxu0 0.0
    %659 = vmatpush1.msra.mxu0 0.0
    %660 = vmatprep.subr.mxu0 0.0
    %661 = vmatpush1.msra.mxu0 0.0
    %662 = vmatprep.subr.mxu0 0.0
    %663 = vmatpush1.msra.mxu0 0.0
    %664 = vmatprep.subr.mxu0 0.0
    %665 = vmatpush1.msra.mxu0 0.0
    %666 = vmatprep.subr.mxu0 0.0
    %667 = vmatpush1.msra.mxu0 0.0
    %668 = vmatprep.subr.mxu0 0.0
    %669 = vmatpush1.msra.mxu0 0.0
    %670 = vmatprep.subr.mxu0 0.0
    %671 = vmatpush1.msra.mxu0 0.0
    %672 = vmatprep.subr.mxu0 0.0
    %673 = vmatpush1.msra.mxu0 0.0
    %674 = vmatprep.subr.mxu0 0.0
    %675 = vmatpush1.msra.mxu0 0.0
    %676 = vmatprep.subr.mxu0 0.0
    %677 = vmatpush1.msra.mxu0 0.0
    %678 = vmatprep.subr.mxu0 0.0
    %679 = vmatpush1.msra.mxu0 0.0
    %680 = vmatprep.subr.mxu0 0.0
    %681 = vmatpush1.msra.mxu0 0.0
    %682 = vmatprep.subr.mxu0 0.0
    %683 = vmatpush1.msra.mxu0 0.0
    %684 = vmatprep.mubr.f32.mxu0 0.0
    %685 = vmatmul.mubr.f32.gmra.mrb[0].mxu0 %v603
    %v686 = vpop.f32.mrb[0].mxu0
    %v687 = vadd.f32 0.0, %v686
    %v688 = vpop.f32.mrb[0].mxu0
    %689 = vmatprep.mubr.f32.mxu0 0.0
    %690 = vmatmul.mubr.f32.gmra.mrb[0].mxu0 %v606
    %v691 = vpop.f32.mrb[0].mxu0
    %v692 = vadd.f32 0.0, %v691
    %v693 = vpop.f32.mrb[0].mxu0
    %694 = vmatprep.mubr.f32.mxu0 0.0
    %695 = vmatmul.mubr.f32.gmra.mrb[0].mxu0 %v609
    %v696 = vpop.f32.mrb[0].mxu0
    %v697 = vadd.f32 0.0, %v696
    %v698 = vpop.f32.mrb[0].mxu0
    %699 = vmatprep.mubr.f32.mxu0 0.0
    %700 = vmatmul.mubr.f32.gmra.mrb[0].mxu0 %v612
    %v701 = vpop.f32.mrb[0].mxu0
    %v702 = vadd.f32 0.0, %v701
    %v703 = vpop.f32.mrb[0].mxu0
    %704 = vmatprep.mubr.f32.mxu0 0.0
    %705 = vmatmul.mubr.f32.gmra.mrb[0].mxu0 %v615
    %v706 = vpop.f32.mrb[0].mxu0
    %v707 = vadd.f32 0.0, %v706
    %v708 = vpop.f32.mrb[0].mxu0
    %709 = vmatprep.mubr.f32.mxu0 0.0
    %710 = vmatmul.mubr.f32.gmra.mrb[0].mxu0 %v618
    %v711 = vpop.f32.mrb[0].mxu0
    %v712 = vadd.f32 0.0, %v711
    %v713 = vpop.f32.mrb[0].mxu0
    %714 = vdwg.mxu0
    %721 = vrot.lane.b32.xlu0 %v687, 64
    %v722 = vpop.permute.xlu0 %721
    %723 = vrot.lane.b32.xlu0 %v692, 64
    %v724 = vpop.permute.xlu0 %723
    %725 = vrot.lane.b32.xlu0 %v697, 64
    %v726 = vpop.permute.xlu0 %725
    %727 = vrot.lane.b32.xlu0 %v702, 64
    %v728 = vpop.permute.xlu0 %727
    %729 = vrot.lane.b32.xlu0 %v707, 64
    %v730 = vpop.permute.xlu0 %729
    %731 = vrot.lane.b32.xlu0 %v712, 64
    %v732 = vpop.permute.xlu0 %731
    %v739 = vadd.f32 %v560, %v722
    %v740 = vadd.f32 %v565, %v724
    %v741 = vadd.f32 %v570, %v726
    %v742 = vadd.f32 %v575, %v728
    %v743 = vadd.f32 %v580, %v730
    %v744 = vadd.f32 %v585, %v732
    %v745 = vmax.f32 %v739, 0.0
    %v746 = vmax.f32 %v740, 0.0
    %v747 = vmax.f32 %v741, 0.0
    %v748 = vmax.f32 %v742, 0.0
    %v749 = vmax.f32 %v743, 0.0
    %v750 = vmax.f32 %v744, 0.0
    %751 = vrot.lane.b32.xlu0 %v139, 64
    %v752 = vpop.permute.xlu0 %751
    %753 = vrot.lane.b32.xlu0 %v144, 64
    %v754 = vpop.permute.xlu0 %753
    %755 = vrot.lane.b32.xlu0 %v149, 64
    %v756 = vpop.permute.xlu0 %755
    %757 = vrot.lane.b32.xlu0 %v154, 64
    %v758 = vpop.permute.xlu0 %757
    %759 = vrot.lane.b32.xlu0 %v159, 64
    %v760 = vpop.permute.xlu0 %759
    %761 = vrot.lane.b32.xlu0 %v164, 64
    %v762 = vpop.permute.xlu0 %761
    %v769 = vadd.f32 %v745, %v752
    %v770 = vadd.f32 %v746, %v754
    %v771 = vadd.f32 %v747, %v756
    %v772 = vadd.f32 %v748, %v758
    %v773 = vadd.f32 %v749, %v760
    %v774 = vadd.f32 %v750, %v762
    %781 = vrot.lane.b32.xlu0 %v769, 64
    %v782 = vpop.permute.xlu0 %781
    %783 = vrot.lane.b32.xlu0 %v770, 64
    %v784 = vpop.permute.xlu0 %783
    %785 = vrot.lane.b32.xlu0 %v771, 64
    %v786 = vpop.permute.xlu0 %785
    %787 = vrot.lane.b32.xlu0 %v772, 64
    %v788 = vpop.permute.xlu0 %787
    %789 = vrot.lane.b32.xlu0 %v773, 64
    %v790 = vpop.permute.xlu0 %789
    %791 = vrot.lane.b32.xlu0 %v774, 64
    %v792 = vpop.permute.xlu0 %791
    %v799 = vrot.slane %v782, 4
    %v800 = vrot.slane %v784, 4
    %v801 = vrot.slane %v786, 4
    %v802 = vrot.slane %v788, 4
    %v803 = vrot.slane %v790, 4
    %v804 = vrot.slane %v792, 4
    %v805 = vsel %vm288, %v803, %v804
    %v806 = vsel %vm288, %v802, %v803
    %v807 = vsel %vm288, %v801, %v802
    %v808 = vsel %vm288, %v800, %v801
    %v809 = vsel %vm288, %v799, %v800
    %v810 = vsel %vm288, %v804, %v799
    %v811 = vsel %vm295, %v810, 0.0
    %v812 = vsel %vm296, %v809, 0.0
    %v813 = vsel %vm297, %v808, 0.0
    %v814 = vsel %vm298, %v807, 0.0
    %v815 = vsel %vm299, %v806, 0.0
    %v816 = vsel %vm300, %v805, 0.0
    %v817 = vrot.slane %v782, 6
    %v818 = vrot.slane %v784, 6
    %v819 = vrot.slane %v786, 6
    %v820 = vrot.slane %v788, 6
    %v821 = vrot.slane %v790, 6
    %v822 = vrot.slane %v792, 6
    %v823 = vsel %vm313, %v821, %v822
    %v824 = vsel %vm313, %v820, %v821
    %v825 = vsel %vm313, %v819, %v820
    %v826 = vsel %vm313, %v818, %v819
    %v827 = vsel %vm313, %v817, %v818
    %v828 = vsel %vm313, %v822, %v817
    %v829 = vsel %vm320, %v828, 0.0
    %v830 = vsel %vm321, %v827, 0.0
    %v831 = vsel %vm322, %v826, 0.0
    %v832 = vsel %vm323, %v825, 0.0
    %v833 = vsel %vm324, %v824, 0.0
    %v834 = vsel %vm325, %v823, 0.0
    %841 = vrot.lane.b32.xlu0 %v829, 32
    %v842 = vpop.permute.xlu0 %841
    %843 = vrot.lane.b32.xlu0 %v830, 32
    %v844 = vpop.permute.xlu0 %843
    %845 = vrot.lane.b32.xlu0 %v831, 32
    %v846 = vpop.permute.xlu0 %845
    %847 = vrot.lane.b32.xlu0 %v832, 32
    %v848 = vpop.permute.xlu0 %847
    %849 = vrot.lane.b32.xlu0 %v833, 32
    %v850 = vpop.permute.xlu0 %849
    %851 = vrot.lane.b32.xlu0 %v834, 32
    %v852 = vpop.permute.xlu0 %851
    %865 = vrot.lane.b32.xlu0 %v811, 64
    %v866 = vpop.permute.xlu0 %865
    %867 = vrot.lane.b32.xlu0 %v812, 64
    %v868 = vpop.permute.xlu0 %867
    %869 = vrot.lane.b32.xlu0 %v813, 64
    %v870 = vpop.permute.xlu0 %869
    %871 = vrot.lane.b32.xlu0 %v814, 64
    %v872 = vpop.permute.xlu0 %871
    %873 = vrot.lane.b32.xlu0 %v815, 64
    %v874 = vpop.permute.xlu0 %873
    %875 = vrot.lane.b32.xlu0 %v816, 64
    %v876 = vpop.permute.xlu0 %875
    %883 = vrot.lane.b32.xlu0 %v829, 96
    %v884 = vpop.permute.xlu0 %883
    %885 = vrot.lane.b32.xlu0 %v830, 96
    %v886 = vpop.permute.xlu0 %885
    %887 = vrot.lane.b32.xlu0 %v831, 96
    %v888 = vpop.permute.xlu0 %887
    %889 = vrot.lane.b32.xlu0 %v832, 96
    %v890 = vpop.permute.xlu0 %889
    %891 = vrot.lane.b32.xlu0 %v833, 96
    %v892 = vpop.permute.xlu0 %891
    %893 = vrot.lane.b32.xlu0 %v834, 96
    %v894 = vpop.permute.xlu0 %893
    %v901 = vsel %vm429, %v811, %v842
    %v902 = vsel %vm429, %v812, %v844
    %v903 = vsel %vm429, %v813, %v846
    %v904 = vsel %vm429, %v814, %v848
    %v905 = vsel %vm429, %v815, %v850
    %v906 = vsel %vm429, %v816, %v852
    %v907 = vsel %vm436, %v901, %v866
    %v908 = vsel %vm436, %v902, %v868
    %v909 = vsel %vm436, %v903, %v870
    %v910 = vsel %vm436, %v904, %v872
    %v911 = vsel %vm436, %v905, %v874
    %v912 = vsel %vm436, %v906, %v876
    %v913 = vsel %vm443, %v907, %v884
    %v914 = vsel %vm443, %v908, %v886
    %v915 = vsel %vm443, %v909, %v888
    %v916 = vsel %vm443, %v910, %v890
    %v917 = vsel %vm443, %v911, %v892
    %v918 = vsel %vm443, %v912, %v894
    %s919 = scalar_lea.vmem [#allocation2], 160
    %v920 = vld [vmem:[%s919] sm:$0xff]
    %v921 = vld [vmem:[%s919 + $0x8] sm:$0xff]
    %v922 = vld [vmem:[%s919 + $0x10] sm:$0xff]
    %v923 = vld [vmem:[%s919 + $0x18] sm:$0xff]
    %v924 = vld [vmem:[%s919 + $0x20] sm:$0xff]
    %v925 = vld [vmem:[%s919 + $0x28] sm:$0xff]
    %v926 = vld [vmem:[%s919 + $0x30] sm:$0xff]
    %v927 = vld [vmem:[%s919 + $0x38] sm:$0xff]
    %v928 = vld [vmem:[%s919 + $0x40] sm:$0xff]
    %v929 = vld [vmem:[%s919 + $0x48] sm:$0xff]
    %v930 = vld [vmem:[%s919 + $0x50] sm:$0xff]
    %v931 = vld [vmem:[%s919 + $0x58] sm:$0xff]
    %v932 = vld [vmem:[%s919 + $0x60] sm:$0xff]
    %v933 = vld [vmem:[%s919 + $0x68] sm:$0xff]
    %v934 = vld [vmem:[%s919 + $0x70] sm:$0xff]
    %v935 = vld [vmem:[%s919 + $0x78] sm:$0xff]
    %v936 = vld [vmem:[%s919 + $0x80] sm:$0xff]
    %v937 = vld [vmem:[%s919 + $0x88] sm:$0xff]
    %v938 = vld [vmem:[%s919 + $0x90] sm:$0xff]
    %v939 = vld [vmem:[%s919 + $0x98] sm:$0xff]
    %v940 = vld [vmem:[%s5 + $0x2] sm:$0x1]
    %v941 = vlaneseq
    %v942 = vshrl.u32 %v941, 7
    %v943 = vsub.s32 0, %v942
    %v944 = vrot.slane %v940, %v943
    %v945 = vsel %vm429, %v782, 0
    %v947 = vsel %vm429, %v784, 0
    %v949 = vsel %vm429, %v786, 0
    %v951 = vsel %vm429, %v788, 0
    %v953 = vsel %vm429, %v790, 0
    %v955 = vsel %vm429, %v792, 0
    %957 = vmatprep.subr.mxu0 0.0
    %958 = vmatpush1.msra.mxu0 %v920
    %959 = vmatprep.subr.mxu0 0.0
    %960 = vmatpush1.msra.mxu0 %v921
    %961 = vmatprep.subr.mxu0 0.0
    %962 = vmatpush1.msra.mxu0 %v922
    %963 = vmatprep.subr.mxu0 0.0
    %964 = vmatpush1.msra.mxu0 %v923
    %965 = vmatprep.subr.mxu0 0.0
    %966 = vmatpush1.msra.mxu0 %v924
    %967 = vmatprep.subr.mxu0 0.0
    %968 = vmatpush1.msra.mxu0 %v925
    %969 = vmatprep.subr.mxu0 0.0
    %970 = vmatpush1.msra.mxu0 %v926
    %971 = vmatprep.subr.mxu0 0.0
    %972 = vmatpush1.msra.mxu0 %v927
    %973 = vmatprep.subr.mxu0 0.0
    %974 = vmatpush1.msra.mxu0 %v928
    %975 = vmatprep.subr.mxu0 0.0
    %976 = vmatpush1.msra.mxu0 %v929
    %977 = vmatprep.subr.mxu0 0.0
    %978 = vmatpush1.msra.mxu0 %v930
    %979 = vmatprep.subr.mxu0 0.0
    %980 = vmatpush1.msra.mxu0 %v931
    %981 = vmatprep.subr.mxu0 0.0
    %982 = vmatpush1.msra.mxu0 %v932
    %983 = vmatprep.subr.mxu0 0.0
    %984 = vmatpush1.msra.mxu0 %v933
    %985 = vmatprep.subr.mxu0 0.0
    %986 = vmatpush1.msra.mxu0 %v934
    %987 = vmatprep.subr.mxu0 0.0
    %988 = vmatpush1.msra.mxu0 %v935
    %989 = vmatprep.subr.mxu0 0.0
    %990 = vmatpush1.msra.mxu0 %v936
    %991 = vmatprep.subr.mxu0 0.0
    %992 = vmatpush1.msra.mxu0 %v937
    %993 = vmatprep.subr.mxu0 0.0
    %994 = vmatpush1.msra.mxu0 %v938
    %995 = vmatprep.subr.mxu0 0.0
    %996 = vmatpush1.msra.mxu0 %v939
    %997 = vmatprep.subr.mxu0 0.0
    %998 = vmatpush1.msra.mxu0 0.0
    %999 = vmatprep.subr.mxu0 0.0
    %1000 = vmatpush1.msra.mxu0 0.0
    %1001 = vmatprep.subr.mxu0 0.0
    %1002 = vmatpush1.msra.mxu0 0.0
    %1003 = vmatprep.subr.mxu0 0.0
    %1004 = vmatpush1.msra.mxu0 0.0
    %1005 = vmatprep.subr.mxu0 0.0
    %1006 = vmatpush1.msra.mxu0 0.0
    %1007 = vmatprep.subr.mxu0 0.0
    %1008 = vmatpush1.msra.mxu0 0.0
    %1009 = vmatprep.subr.mxu0 0.0
    %1010 = vmatpush1.msra.mxu0 0.0
    %1011 = vmatprep.subr.mxu0 0.0
    %1012 = vmatpush1.msra.mxu0 0.0
    %1013 = vmatprep.subr.mxu0 0.0
    %1014 = vmatpush1.msra.mxu0 0.0
    %1015 = vmatprep.subr.mxu0 0.0
    %1016 = vmatpush1.msra.mxu0 0.0
    %1017 = vmatprep.subr.mxu0 0.0
    %1018 = vmatpush1.msra.mxu0 0.0
    %1019 = vmatprep.subr.mxu0 0.0
    %1020 = vmatpush1.msra.mxu0 0.0
    %1021 = vmatprep.mubr.f32.mxu0 %v945
    %1022 = vmatmul.mubr.f32.gmra.mrb[0].mxu0 %v913
    %v1023 = vpop.f32.mrb[0].mxu0
    %v1024 = vadd.f32 %v944, %v1023
    %v1025 = vpop.f32.mrb[0].mxu0
    %1026 = vmatprep.mubr.f32.mxu0 %v947
    %1027 = vmatmul.mubr.f32.gmra.mrb[0].mxu0 %v914
    %v1028 = vpop.f32.mrb[0].mxu0
    %v1029 = vadd.f32 %v944, %v1028
    %v1030 = vpop.f32.mrb[0].mxu0
    %1031 = vmatprep.mubr.f32.mxu0 %v949
    %1032 = vmatmul.mubr.f32.gmra.mrb[0].mxu0 %v915
    %v1033 = vpop.f32.mrb[0].mxu0
    %v1034 = vadd.f32 %v944, %v1033
    %v1035 = vpop.f32.mrb[0].mxu0
    %1036 = vmatprep.mubr.f32.mxu0 %v951
    %1037 = vmatmul.mubr.f32.gmra.mrb[0].mxu0 %v916
    %v1038 = vpop.f32.mrb[0].mxu0
    %v1039 = vadd.f32 %v944, %v1038
    %v1040 = vpop.f32.mrb[0].mxu0
    %1041 = vmatprep.mubr.f32.mxu0 %v953
    %1042 = vmatmul.mubr.f32.gmra.mrb[0].mxu0 %v917
    %v1043 = vpop.f32.mrb[0].mxu0
    %v1044 = vadd.f32 %v944, %v1043
    %v1045 = vpop.f32.mrb[0].mxu0
    %1046 = vmatprep.mubr.f32.mxu0 %v955
    %1047 = vmatmul.mubr.f32.gmra.mrb[0].mxu0 %v918
    %v1048 = vpop.f32.mrb[0].mxu0
    %v1049 = vadd.f32 %v944, %v1048
    %v1050 = vpop.f32.mrb[0].mxu0
    %1051 = vdwg.mxu0
    %v1052 = vmax.f32 %v1024, 0.0
    %v1053 = vmax.f32 %v1029, 0.0
    %v1054 = vmax.f32 %v1034, 0.0
    %v1055 = vmax.f32 %v1039, 0.0
    %v1056 = vmax.f32 %v1044, 0.0
    %v1057 = vmax.f32 %v1049, 0.0
    %s1058 = scalar_lea.vmem %s3, 64
    %v1059 = vld [vmem:[%s1058] sm:$0xff]
    %v1060 = vld [vmem:[%s1058 + $0x8] sm:$0xff]
    %v1061 = vld [vmem:[%s1058 + $0x10] sm:$0xff]
    %v1062 = vld [vmem:[%s1058 + $0x18] sm:$0xff]
    %v1063 = vld [vmem:[%s1058 + $0x20] sm:$0xff]
    %v1064 = vld [vmem:[%s1058 + $0x28] sm:$0xff]
    %v1065 = vld [vmem:[%s1058 + $0x30] sm:$0xff]
    %v1066 = vld [vmem:[%s1058 + $0x38] sm:$0xff]
    %v1068 = vsel %vm436, %v1052, 0
    %v1071 = vsel %vm436, %v1053, 0
    %v1074 = vsel %vm436, %v1054, 0
    %v1077 = vsel %vm436, %v1055, 0
    %v1080 = vsel %vm436, %v1056, 0
    %v1083 = vsel %vm436, %v1057, 0
    %1085 = vmatprep.subr.mxu0 0.0
    %1086 = vmatpush1.msra.mxu0 %v1059
    %1087 = vmatprep.subr.mxu0 0.0
    %1088 = vmatpush1.msra.mxu0 %v1060
    %1089 = vmatprep.subr.mxu0 0.0
    %1090 = vmatpush1.msra.mxu0 %v1061
    %1091 = vmatprep.subr.mxu0 0.0
    %1092 = vmatpush1.msra.mxu0 %v1062
    %1093 = vmatprep.subr.mxu0 0.0
    %1094 = vmatpush1.msra.mxu0 %v1063
    %1095 = vmatprep.subr.mxu0 0.0
    %1096 = vmatpush1.msra.mxu0 %v1064
    %1097 = vmatprep.subr.mxu0 0.0
    %1098 = vmatpush1.msra.mxu0 %v1065
    %1099 = vmatprep.subr.mxu0 0.0
    %1100 = vmatpush1.msra.mxu0 %v1066
    %1101 = vmatprep.subr.mxu0 0.0
    %1102 = vmatpush1.msra.mxu0 0.0
    %1103 = vmatprep.subr.mxu0 0.0
    %1104 = vmatpush1.msra.mxu0 0.0
    %1105 = vmatprep.subr.mxu0 0.0
    %1106 = vmatpush1.msra.mxu0 0.0
    %1107 = vmatprep.subr.mxu0 0.0
    %1108 = vmatpush1.msra.mxu0 0.0
    %1109 = vmatprep.subr.mxu0 0.0
    %1110 = vmatpush1.msra.mxu0 0.0
    %1111 = vmatprep.subr.mxu0 0.0
    %1112 = vmatpush1.msra.mxu0 0.0
    %1113 = vmatprep.subr.mxu0 0.0
    %1114 = vmatpush1.msra.mxu0 0.0
    %1115 = vmatprep.subr.mxu0 0.0
    %1116 = vmatpush1.msra.mxu0 0.0
    %1117 = vmatprep.subr.mxu0 0.0
    %1118 = vmatpush1.msra.mxu0 0.0
    %1119 = vmatprep.subr.mxu0 0.0
    %1120 = vmatpush1.msra.mxu0 0.0
    %1121 = vmatprep.subr.mxu0 0.0
    %1122 = vmatpush1.msra.mxu0 0.0
    %1123 = vmatprep.subr.mxu0 0.0
    %1124 = vmatpush1.msra.mxu0 0.0
    %1125 = vmatprep.subr.mxu0 0.0
    %1126 = vmatpush1.msra.mxu0 0.0
    %1127 = vmatprep.subr.mxu0 0.0
    %1128 = vmatpush1.msra.mxu0 0.0
    %1129 = vmatprep.subr.mxu0 0.0
    %1130 = vmatpush1.msra.mxu0 0.0
    %1131 = vmatprep.subr.mxu0 0.0
    %1132 = vmatpush1.msra.mxu0 0.0
    %1133 = vmatprep.subr.mxu0 0.0
    %1134 = vmatpush1.msra.mxu0 0.0
    %1135 = vmatprep.subr.mxu0 0.0
    %1136 = vmatpush1.msra.mxu0 0.0
    %1137 = vmatprep.subr.mxu0 0.0
    %1138 = vmatpush1.msra.mxu0 0.0
    %1139 = vmatprep.subr.mxu0 0.0
    %1140 = vmatpush1.msra.mxu0 0.0
    %1141 = vmatprep.subr.mxu0 0.0
    %1142 = vmatpush1.msra.mxu0 0.0
    %1143 = vmatprep.subr.mxu0 0.0
    %1144 = vmatpush1.msra.mxu0 0.0
    %1145 = vmatprep.subr.mxu0 0.0
    %1146 = vmatpush1.msra.mxu0 0.0
    %1147 = vmatprep.subr.mxu0 0.0
    %1148 = vmatpush1.msra.mxu0 0.0
    %1149 = vmatprep.mubr.f32.mxu0 0.0
    %1150 = vmatmul.mubr.f32.gmra.mrb[0].mxu0 %v1068
    %v1151 = vpop.f32.mrb[0].mxu0
    %v1152 = vadd.f32 0.0, %v1151
    %v1153 = vpop.f32.mrb[0].mxu0
    %1154 = vmatprep.mubr.f32.mxu0 0.0
    %1155 = vmatmul.mubr.f32.gmra.mrb[0].mxu0 %v1071
    %v1156 = vpop.f32.mrb[0].mxu0
    %v1157 = vadd.f32 0.0, %v1156
    %v1158 = vpop.f32.mrb[0].mxu0
    %1159 = vmatprep.mubr.f32.mxu0 0.0
    %1160 = vmatmul.mubr.f32.gmra.mrb[0].mxu0 %v1074
    %v1161 = vpop.f32.mrb[0].mxu0
    %v1162 = vadd.f32 0.0, %v1161
    %v1163 = vpop.f32.mrb[0].mxu0
    %1164 = vmatprep.mubr.f32.mxu0 0.0
    %1165 = vmatmul.mubr.f32.gmra.mrb[0].mxu0 %v1077
    %v1166 = vpop.f32.mrb[0].mxu0
    %v1167 = vadd.f32 0.0, %v1166
    %v1168 = vpop.f32.mrb[0].mxu0
    %1169 = vmatprep.mubr.f32.mxu0 0.0
    %1170 = vmatmul.mubr.f32.gmra.mrb[0].mxu0 %v1080
    %v1171 = vpop.f32.mrb[0].mxu0
    %v1172 = vadd.f32 0.0, %v1171
    %v1173 = vpop.f32.mrb[0].mxu0
    %1174 = vmatprep.mubr.f32.mxu0 0.0
    %1175 = vmatmul.mubr.f32.gmra.mrb[0].mxu0 %v1083
    %v1176 = vpop.f32.mrb[0].mxu0
    %v1177 = vadd.f32 0.0, %v1176
    %v1178 = vpop.f32.mrb[0].mxu0
    %1179 = vdwg.mxu0
    %1186 = vrot.lane.b32.xlu0 %v1152, 64
    %v1187 = vpop.permute.xlu0 %1186
    %1188 = vrot.lane.b32.xlu0 %v1157, 64
    %v1189 = vpop.permute.xlu0 %1188
    %1190 = vrot.lane.b32.xlu0 %v1162, 64
    %v1191 = vpop.permute.xlu0 %1190
    %1192 = vrot.lane.b32.xlu0 %v1167, 64
    %v1193 = vpop.permute.xlu0 %1192
    %1194 = vrot.lane.b32.xlu0 %v1172, 64
    %v1195 = vpop.permute.xlu0 %1194
    %1196 = vrot.lane.b32.xlu0 %v1177, 64
    %v1197 = vpop.permute.xlu0 %1196
    %v1204 = vadd.f32 %v1024, %v1187
    %v1205 = vadd.f32 %v1029, %v1189
    %v1206 = vadd.f32 %v1034, %v1191
    %v1207 = vadd.f32 %v1039, %v1193
    %v1208 = vadd.f32 %v1044, %v1195
    %v1209 = vadd.f32 %v1049, %v1197
    %v1210 = vmax.f32 %v1204, 0.0
    %v1211 = vmax.f32 %v1205, 0.0
    %v1212 = vmax.f32 %v1206, 0.0
    %v1213 = vmax.f32 %v1207, 0.0
    %v1214 = vmax.f32 %v1208, 0.0
    %v1215 = vmax.f32 %v1209, 0.0
    %v1216 = vadd.f32 %v1210, %v769
    %v1217 = vadd.f32 %v1211, %v770
    %v1218 = vadd.f32 %v1212, %v771
    %v1219 = vadd.f32 %v1213, %v772
    %v1220 = vadd.f32 %v1214, %v773
    %v1221 = vadd.f32 %v1215, %v774
    %1228 = vrot.lane.b32.xlu0 %v1216, 64
    %v1229 = vpop.permute.xlu0 %1228
    %1230 = vrot.lane.b32.xlu0 %v1217, 64
    %v1231 = vpop.permute.xlu0 %1230
    %1232 = vrot.lane.b32.xlu0 %v1218, 64
    %v1233 = vpop.permute.xlu0 %1232
    %1234 = vrot.lane.b32.xlu0 %v1219, 64
    %v1235 = vpop.permute.xlu0 %1234
    %1236 = vrot.lane.b32.xlu0 %v1220, 64
    %v1237 = vpop.permute.xlu0 %1236
    %1238 = vrot.lane.b32.xlu0 %v1221, 64
    %v1239 = vpop.permute.xlu0 %1238
    %v1246 = vrot.slane %v1229, 6
    %v1247 = vrot.slane %v1231, 6
    %v1248 = vrot.slane %v1233, 6
    %v1249 = vrot.slane %v1235, 6
    %v1250 = vrot.slane %v1237, 6
    %v1251 = vrot.slane %v1239, 6
    %v1252 = vsel %vm313, %v1250, %v1251
    %v1253 = vsel %vm313, %v1249, %v1250
    %v1254 = vsel %vm313, %v1248, %v1249
    %v1255 = vsel %vm313, %v1247, %v1248
    %v1256 = vsel %vm313, %v1246, %v1247
    %v1257 = vsel %vm313, %v1251, %v1246
    %v1258 = vsel %vm320, %v1257, 0.0
    %v1259 = vsel %vm321, %v1256, 0.0
    %v1260 = vsel %vm322, %v1255, 0.0
    %v1261 = vsel %vm323, %v1254, 0.0
    %v1262 = vsel %vm324, %v1253, 0.0
    %v1263 = vsel %vm325, %v1252, 0.0
    %v1264 = vrot.slane %v1229, 7
    %v1265 = vrot.slane %v1231, 7
    %v1266 = vrot.slane %v1233, 7
    %v1267 = vrot.slane %v1235, 7
    %v1268 = vrot.slane %v1237, 7
    %v1269 = vrot.slane %v1239, 7
    %v1270 = vsel %vm338, %v1268, %v1269
    %v1271 = vsel %vm338, %v1267, %v1268
    %v1272 = vsel %vm338, %v1266, %v1267
    %v1273 = vsel %vm338, %v1265, %v1266
    %v1274 = vsel %vm338, %v1264, %v1265
    %v1275 = vsel %vm338, %v1269, %v1264
    %v1276 = vsel %vm345, %v1275, 0.0
    %v1277 = vsel %vm346, %v1274, 0.0
    %v1278 = vsel %vm347, %v1273, 0.0
    %v1279 = vsel %vm348, %v1272, 0.0
    %v1280 = vsel %vm349, %v1271, 0.0
    %v1281 = vsel %vm350, %v1270, 0.0
    %v1282 = vsel %vm270, %v1239, 0.0
    %v1283 = vsel %vm271, %v1229, 0.0
    %v1284 = vsel %vm272, %v1231, 0.0
    %v1285 = vsel %vm273, %v1233, 0.0
    %v1286 = vsel %vm274, %v1235, 0.0
    %v1287 = vsel %vm275, %v1237, 0.0
    %v1288 = vrot.slane %v1229, 4
    %v1289 = vrot.slane %v1231, 4
    %v1290 = vrot.slane %v1233, 4
    %v1291 = vrot.slane %v1235, 4
    %v1292 = vrot.slane %v1237, 4
    %v1293 = vrot.slane %v1239, 4
    %v1294 = vsel %vm288, %v1292, %v1293
    %v1295 = vsel %vm288, %v1291, %v1292
    %v1296 = vsel %vm288, %v1290, %v1291
    %v1297 = vsel %vm288, %v1289, %v1290
    %v1298 = vsel %vm288, %v1288, %v1289
    %v1299 = vsel %vm288, %v1293, %v1288
    %v1300 = vsel %vm295, %v1299, 0.0
    %v1301 = vsel %vm296, %v1298, 0.0
    %v1302 = vsel %vm297, %v1297, 0.0
    %v1303 = vsel %vm298, %v1296, 0.0
    %v1304 = vsel %vm299, %v1295, 0.0
    %v1305 = vsel %vm300, %v1294, 0.0
    %1312 = vrot.lane.b32.xlu0 %v1276, 32
    %v1313 = vpop.permute.xlu0 %1312
    %1314 = vrot.lane.b32.xlu0 %v1277, 32
    %v1315 = vpop.permute.xlu0 %1314
    %1316 = vrot.lane.b32.xlu0 %v1278, 32
    %v1317 = vpop.permute.xlu0 %1316
    %1318 = vrot.lane.b32.xlu0 %v1279, 32
    %v1319 = vpop.permute.xlu0 %1318
    %1320 = vrot.lane.b32.xlu0 %v1280, 32
    %v1321 = vpop.permute.xlu0 %1320
    %1322 = vrot.lane.b32.xlu0 %v1281, 32
    %v1323 = vpop.permute.xlu0 %1322
    %1336 = vrot.lane.b32.xlu0 %v1282, 64
    %v1337 = vpop.permute.xlu0 %1336
    %1338 = vrot.lane.b32.xlu0 %v1283, 64
    %v1339 = vpop.permute.xlu0 %1338
    %1340 = vrot.lane.b32.xlu0 %v1284, 64
    %v1341 = vpop.permute.xlu0 %1340
    %1342 = vrot.lane.b32.xlu0 %v1285, 64
    %v1343 = vpop.permute.xlu0 %1342
    %1344 = vrot.lane.b32.xlu0 %v1286, 64
    %v1345 = vpop.permute.xlu0 %1344
    %1346 = vrot.lane.b32.xlu0 %v1287, 64
    %v1347 = vpop.permute.xlu0 %1346
    %1360 = vrot.lane.b32.xlu0 %v1300, 96
    %v1361 = vpop.permute.xlu0 %1360
    %1362 = vrot.lane.b32.xlu0 %v1301, 96
    %v1363 = vpop.permute.xlu0 %1362
    %1364 = vrot.lane.b32.xlu0 %v1302, 96
    %v1365 = vpop.permute.xlu0 %1364
    %1366 = vrot.lane.b32.xlu0 %v1303, 96
    %v1367 = vpop.permute.xlu0 %1366
    %1368 = vrot.lane.b32.xlu0 %v1304, 96
    %v1369 = vpop.permute.xlu0 %1368
    %1370 = vrot.lane.b32.xlu0 %v1305, 96
    %v1371 = vpop.permute.xlu0 %1370
    %v1378 = vsel %vm429, %v1258, %v1313
    %v1379 = vsel %vm429, %v1259, %v1315
    %v1380 = vsel %vm429, %v1260, %v1317
    %v1381 = vsel %vm429, %v1261, %v1319
    %v1382 = vsel %vm429, %v1262, %v1321
    %v1383 = vsel %vm429, %v1263, %v1323
    %v1384 = vsel %vm436, %v1378, %v1337
    %v1385 = vsel %vm436, %v1379, %v1339
    %v1386 = vsel %vm436, %v1380, %v1341
    %v1387 = vsel %vm436, %v1381, %v1343
    %v1388 = vsel %vm436, %v1382, %v1345
    %v1389 = vsel %vm436, %v1383, %v1347
    %v1390 = vsel %vm443, %v1384, %v1361
    %v1391 = vsel %vm443, %v1385, %v1363
    %v1392 = vsel %vm443, %v1386, %v1365
    %v1393 = vsel %vm443, %v1387, %v1367
    %v1394 = vsel %vm443, %v1388, %v1369
    %v1395 = vsel %vm443, %v1389, %v1371
    %s1396 = scalar_lea.vmem [#allocation2], 320
    %v1397 = vld [vmem:[%s1396] sm:$0xff]
    %v1398 = vld [vmem:[%s1396 + $0x8] sm:$0xff]
    %v1399 = vld [vmem:[%s1396 + $0x10] sm:$0xff]
    %v1400 = vld [vmem:[%s1396 + $0x18] sm:$0xff]
    %v1401 = vld [vmem:[%s1396 + $0x20] sm:$0xff]
    %v1402 = vld [vmem:[%s1396 + $0x28] sm:$0xff]
    %v1403 = vld [vmem:[%s1396 + $0x30] sm:$0xff]
    %v1404 = vld [vmem:[%s1396 + $0x38] sm:$0xff]
    %v1405 = vld [vmem:[%s1396 + $0x40] sm:$0xff]
    %v1406 = vld [vmem:[%s1396 + $0x48] sm:$0xff]
    %v1407 = vld [vmem:[%s1396 + $0x50] sm:$0xff]
    %v1408 = vld [vmem:[%s1396 + $0x58] sm:$0xff]
    %v1409 = vld [vmem:[%s1396 + $0x60] sm:$0xff]
    %v1410 = vld [vmem:[%s1396 + $0x68] sm:$0xff]
    %v1411 = vld [vmem:[%s1396 + $0x70] sm:$0xff]
    %v1412 = vld [vmem:[%s1396 + $0x78] sm:$0xff]
    %v1413 = vld [vmem:[%s1396 + $0x80] sm:$0xff]
    %v1414 = vld [vmem:[%s1396 + $0x88] sm:$0xff]
    %v1415 = vld [vmem:[%s1396 + $0x90] sm:$0xff]
    %v1416 = vld [vmem:[%s1396 + $0x98] sm:$0xff]
    %v1417 = vld [vmem:[%s5 + $0x3] sm:$0x1]
    %v1418 = vlaneseq
    %v1419 = vshrl.u32 %v1418, 7
    %v1420 = vsub.s32 0, %v1419
    %v1421 = vrot.slane %v1417, %v1420
    %v1422 = vsel %vm429, %v1229, 0
    %v1424 = vsel %vm429, %v1231, 0
    %v1426 = vsel %vm429, %v1233, 0
    %v1428 = vsel %vm429, %v1235, 0
    %v1430 = vsel %vm429, %v1237, 0
    %v1432 = vsel %vm429, %v1239, 0
    %1434 = vmatprep.subr.mxu0 0.0
    %1435 = vmatpush1.msra.mxu0 %v1397
    %1436 = vmatprep.subr.mxu0 0.0
    %1437 = vmatpush1.msra.mxu0 %v1398
    %1438 = vmatprep.subr.mxu0 0.0
    %1439 = vmatpush1.msra.mxu0 %v1399
    %1440 = vmatprep.subr.mxu0 0.0
    %1441 = vmatpush1.msra.mxu0 %v1400
    %1442 = vmatprep.subr.mxu0 0.0
    %1443 = vmatpush1.msra.mxu0 %v1401
    %1444 = vmatprep.subr.mxu0 0.0
    %1445 = vmatpush1.msra.mxu0 %v1402
    %1446 = vmatprep.subr.mxu0 0.0
    %1447 = vmatpush1.msra.mxu0 %v1403
    %1448 = vmatprep.subr.mxu0 0.0
    %1449 = vmatpush1.msra.mxu0 %v1404
    %1450 = vmatprep.subr.mxu0 0.0
    %1451 = vmatpush1.msra.mxu0 %v1405
    %1452 = vmatprep.subr.mxu0 0.0
    %1453 = vmatpush1.msra.mxu0 %v1406
    %1454 = vmatprep.subr.mxu0 0.0
    %1455 = vmatpush1.msra.mxu0 %v1407
    %1456 = vmatprep.subr.mxu0 0.0
    %1457 = vmatpush1.msra.mxu0 %v1408
    %1458 = vmatprep.subr.mxu0 0.0
    %1459 = vmatpush1.msra.mxu0 %v1409
    %1460 = vmatprep.subr.mxu0 0.0
    %1461 = vmatpush1.msra.mxu0 %v1410
    %1462 = vmatprep.subr.mxu0 0.0
    %1463 = vmatpush1.msra.mxu0 %v1411
    %1464 = vmatprep.subr.mxu0 0.0
    %1465 = vmatpush1.msra.mxu0 %v1412
    %1466 = vmatprep.subr.mxu0 0.0
    %1467 = vmatpush1.msra.mxu0 %v1413
    %1468 = vmatprep.subr.mxu0 0.0
    %1469 = vmatpush1.msra.mxu0 %v1414
    %1470 = vmatprep.subr.mxu0 0.0
    %1471 = vmatpush1.msra.mxu0 %v1415
    %1472 = vmatprep.subr.mxu0 0.0
    %1473 = vmatpush1.msra.mxu0 %v1416
    %1474 = vmatprep.subr.mxu0 0.0
    %1475 = vmatpush1.msra.mxu0 0.0
    %1476 = vmatprep.subr.mxu0 0.0
    %1477 = vmatpush1.msra.mxu0 0.0
    %1478 = vmatprep.subr.mxu0 0.0
    %1479 = vmatpush1.msra.mxu0 0.0
    %1480 = vmatprep.subr.mxu0 0.0
    %1481 = vmatpush1.msra.mxu0 0.0
    %1482 = vmatprep.subr.mxu0 0.0
    %1483 = vmatpush1.msra.mxu0 0.0
    %1484 = vmatprep.subr.mxu0 0.0
    %1485 = vmatpush1.msra.mxu0 0.0
    %1486 = vmatprep.subr.mxu0 0.0
    %1487 = vmatpush1.msra.mxu0 0.0
    %1488 = vmatprep.subr.mxu0 0.0
    %1489 = vmatpush1.msra.mxu0 0.0
    %1490 = vmatprep.subr.mxu0 0.0
    %1491 = vmatpush1.msra.mxu0 0.0
    %1492 = vmatprep.subr.mxu0 0.0
    %1493 = vmatpush1.msra.mxu0 0.0
    %1494 = vmatprep.subr.mxu0 0.0
    %1495 = vmatpush1.msra.mxu0 0.0
    %1496 = vmatprep.subr.mxu0 0.0
    %1497 = vmatpush1.msra.mxu0 0.0
    %1498 = vmatprep.mubr.f32.mxu0 %v1422
    %1499 = vmatmul.mubr.f32.gmra.mrb[0].mxu0 %v1390
    %v1500 = vpop.f32.mrb[0].mxu0
    %v1501 = vadd.f32 %v1421, %v1500
    %v1502 = vpop.f32.mrb[0].mxu0
    %1503 = vmatprep.mubr.f32.mxu0 %v1424
    %1504 = vmatmul.mubr.f32.gmra.mrb[0].mxu0 %v1391
    %v1505 = vpop.f32.mrb[0].mxu0
    %v1506 = vadd.f32 %v1421, %v1505
    %v1507 = vpop.f32.mrb[0].mxu0
    %1508 = vmatprep.mubr.f32.mxu0 %v1426
    %1509 = vmatmul.mubr.f32.gmra.mrb[0].mxu0 %v1392
    %v1510 = vpop.f32.mrb[0].mxu0
    %v1511 = vadd.f32 %v1421, %v1510
    %v1512 = vpop.f32.mrb[0].mxu0
    %1513 = vmatprep.mubr.f32.mxu0 %v1428
    %1514 = vmatmul.mubr.f32.gmra.mrb[0].mxu0 %v1393
    %v1515 = vpop.f32.mrb[0].mxu0
    %v1516 = vadd.f32 %v1421, %v1515
    %v1517 = vpop.f32.mrb[0].mxu0
    %1518 = vmatprep.mubr.f32.mxu0 %v1430
    %1519 = vmatmul.mubr.f32.gmra.mrb[0].mxu0 %v1394
    %v1520 = vpop.f32.mrb[0].mxu0
    %v1521 = vadd.f32 %v1421, %v1520
    %v1522 = vpop.f32.mrb[0].mxu0
    %1523 = vmatprep.mubr.f32.mxu0 %v1432
    %1524 = vmatmul.mubr.f32.gmra.mrb[0].mxu0 %v1395
    %v1525 = vpop.f32.mrb[0].mxu0
    %v1526 = vadd.f32 %v1421, %v1525
    %v1527 = vpop.f32.mrb[0].mxu0
    %1528 = vdwg.mxu0
    %v1529 = vmax.f32 %v1501, 0.0
    %v1530 = vmax.f32 %v1506, 0.0
    %v1531 = vmax.f32 %v1511, 0.0
    %v1532 = vmax.f32 %v1516, 0.0
    %v1533 = vmax.f32 %v1521, 0.0
    %v1534 = vmax.f32 %v1526, 0.0
    %s1535 = scalar_lea.vmem %s3, 128
    %v1536 = vld [vmem:[%s1535] sm:$0xff]
    %v1537 = vld [vmem:[%s1535 + $0x8] sm:$0xff]
    %v1538 = vld [vmem:[%s1535 + $0x10] sm:$0xff]
    %v1539 = vld [vmem:[%s1535 + $0x18] sm:$0xff]
    %v1540 = vld [vmem:[%s1535 + $0x20] sm:$0xff]
    %v1541 = vld [vmem:[%s1535 + $0x28] sm:$0xff]
    %v1542 = vld [vmem:[%s1535 + $0x30] sm:$0xff]
    %v1543 = vld [vmem:[%s1535 + $0x38] sm:$0xff]
    %v1545 = vsel %vm436, %v1529, 0
    %v1548 = vsel %vm436, %v1530, 0
    %v1551 = vsel %vm436, %v1531, 0
    %v1554 = vsel %vm436, %v1532, 0
    %v1557 = vsel %vm436, %v1533, 0
    %v1560 = vsel %vm436, %v1534, 0
    %1562 = vmatprep.subr.mxu0 0.0
    %1563 = vmatpush1.msra.mxu0 %v1536
    %1564 = vmatprep.subr.mxu0 0.0
    %1565 = vmatpush1.msra.mxu0 %v1537
    %1566 = vmatprep.subr.mxu0 0.0
    %1567 = vmatpush1.msra.mxu0 %v1538
    %1568 = vmatprep.subr.mxu0 0.0
    %1569 = vmatpush1.msra.mxu0 %v1539
    %1570 = vmatprep.subr.mxu0 0.0
    %1571 = vmatpush1.msra.mxu0 %v1540
    %1572 = vmatprep.subr.mxu0 0.0
    %1573 = vmatpush1.msra.mxu0 %v1541
    %1574 = vmatprep.subr.mxu0 0.0
    %1575 = vmatpush1.msra.mxu0 %v1542
    %1576 = vmatprep.subr.mxu0 0.0
    %1577 = vmatpush1.msra.mxu0 %v1543
    %1578 = vmatprep.subr.mxu0 0.0
    %1579 = vmatpush1.msra.mxu0 0.0
    %1580 = vmatprep.subr.mxu0 0.0
    %1581 = vmatpush1.msra.mxu0 0.0
    %1582 = vmatprep.subr.mxu0 0.0
    %1583 = vmatpush1.msra.mxu0 0.0
    %1584 = vmatprep.subr.mxu0 0.0
    %1585 = vmatpush1.msra.mxu0 0.0
    %1586 = vmatprep.subr.mxu0 0.0
    %1587 = vmatpush1.msra.mxu0 0.0
    %1588 = vmatprep.subr.mxu0 0.0
    %1589 = vmatpush1.msra.mxu0 0.0
    %1590 = vmatprep.subr.mxu0 0.0
    %1591 = vmatpush1.msra.mxu0 0.0
    %1592 = vmatprep.subr.mxu0 0.0
    %1593 = vmatpush1.msra.mxu0 0.0
    %1594 = vmatprep.subr.mxu0 0.0
    %1595 = vmatpush1.msra.mxu0 0.0
    %1596 = vmatprep.subr.mxu0 0.0
    %1597 = vmatpush1.msra.mxu0 0.0
    %1598 = vmatprep.subr.mxu0 0.0
    %1599 = vmatpush1.msra.mxu0 0.0
    %1600 = vmatprep.subr.mxu0 0.0
    %1601 = vmatpush1.msra.mxu0 0.0
    %1602 = vmatprep.subr.mxu0 0.0
    %1603 = vmatpush1.msra.mxu0 0.0
    %1604 = vmatprep.subr.mxu0 0.0
    %1605 = vmatpush1.msra.mxu0 0.0
    %1606 = vmatprep.subr.mxu0 0.0
    %1607 = vmatpush1.msra.mxu0 0.0
    %1608 = vmatprep.subr.mxu0 0.0
    %1609 = vmatpush1.msra.mxu0 0.0
    %1610 = vmatprep.subr.mxu0 0.0
    %1611 = vmatpush1.msra.mxu0 0.0
    %1612 = vmatprep.subr.mxu0 0.0
    %1613 = vmatpush1.msra.mxu0 0.0
    %1614 = vmatprep.subr.mxu0 0.0
    %1615 = vmatpush1.msra.mxu0 0.0
    %1616 = vmatprep.subr.mxu0 0.0
    %1617 = vmatpush1.msra.mxu0 0.0
    %1618 = vmatprep.subr.mxu0 0.0
    %1619 = vmatpush1.msra.mxu0 0.0
    %1620 = vmatprep.subr.mxu0 0.0
    %1621 = vmatpush1.msra.mxu0 0.0
    %1622 = vmatprep.subr.mxu0 0.0
    %1623 = vmatpush1.msra.mxu0 0.0
    %1624 = vmatprep.subr.mxu0 0.0
    %1625 = vmatpush1.msra.mxu0 0.0
    %1626 = vmatprep.mubr.f32.mxu0 0.0
    %1627 = vmatmul.mubr.f32.gmra.mrb[0].mxu0 %v1545
    %v1628 = vpop.f32.mrb[0].mxu0
    %v1629 = vadd.f32 0.0, %v1628
    %v1630 = vpop.f32.mrb[0].mxu0
    %1631 = vmatprep.mubr.f32.mxu0 0.0
    %1632 = vmatmul.mubr.f32.gmra.mrb[0].mxu0 %v1548
    %v1633 = vpop.f32.mrb[0].mxu0
    %v1634 = vadd.f32 0.0, %v1633
    %v1635 = vpop.f32.mrb[0].mxu0
    %1636 = vmatprep.mubr.f32.mxu0 0.0
    %1637 = vmatmul.mubr.f32.gmra.mrb[0].mxu0 %v1551
    %v1638 = vpop.f32.mrb[0].mxu0
    %v1639 = vadd.f32 0.0, %v1638
    %v1640 = vpop.f32.mrb[0].mxu0
    %1641 = vmatprep.mubr.f32.mxu0 0.0
    %1642 = vmatmul.mubr.f32.gmra.mrb[0].mxu0 %v1554
    %v1643 = vpop.f32.mrb[0].mxu0
    %v1644 = vadd.f32 0.0, %v1643
    %v1645 = vpop.f32.mrb[0].mxu0
    %1646 = vmatprep.mubr.f32.mxu0 0.0
    %1647 = vmatmul.mubr.f32.gmra.mrb[0].mxu0 %v1557
    %v1648 = vpop.f32.mrb[0].mxu0
    %v1649 = vadd.f32 0.0, %v1648
    %v1650 = vpop.f32.mrb[0].mxu0
    %1651 = vmatprep.mubr.f32.mxu0 0.0
    %1652 = vmatmul.mubr.f32.gmra.mrb[0].mxu0 %v1560
    %v1653 = vpop.f32.mrb[0].mxu0
    %v1654 = vadd.f32 0.0, %v1653
    %v1655 = vpop.f32.mrb[0].mxu0
    %1656 = vdwg.mxu0
    %1663 = vrot.lane.b32.xlu0 %v1629, 64
    %v1664 = vpop.permute.xlu0 %1663
    %1665 = vrot.lane.b32.xlu0 %v1634, 64
    %v1666 = vpop.permute.xlu0 %1665
    %1667 = vrot.lane.b32.xlu0 %v1639, 64
    %v1668 = vpop.permute.xlu0 %1667
    %1669 = vrot.lane.b32.xlu0 %v1644, 64
    %v1670 = vpop.permute.xlu0 %1669
    %1671 = vrot.lane.b32.xlu0 %v1649, 64
    %v1672 = vpop.permute.xlu0 %1671
    %1673 = vrot.lane.b32.xlu0 %v1654, 64
    %v1674 = vpop.permute.xlu0 %1673
    %v1681 = vadd.f32 %v1501, %v1664
    %v1682 = vadd.f32 %v1506, %v1666
    %v1683 = vadd.f32 %v1511, %v1668
    %v1684 = vadd.f32 %v1516, %v1670
    %v1685 = vadd.f32 %v1521, %v1672
    %v1686 = vadd.f32 %v1526, %v1674
    %v1687 = vmax.f32 %v1681, 0.0
    %v1688 = vmax.f32 %v1682, 0.0
    %v1689 = vmax.f32 %v1683, 0.0
    %v1690 = vmax.f32 %v1684, 0.0
    %v1691 = vmax.f32 %v1685, 0.0
    %v1692 = vmax.f32 %v1686, 0.0
    %v1693 = vadd.f32 %v1687, %v1216
    %v1694 = vadd.f32 %v1688, %v1217
    %v1695 = vadd.f32 %v1689, %v1218
    %v1696 = vadd.f32 %v1690, %v1219
    %v1697 = vadd.f32 %v1691, %v1220
    %v1698 = vadd.f32 %v1692, %v1221
    %v1699 = vld [vmem:[%s4] sm:$0xff]
    %v1700 = vld [vmem:[%s4 + $0x8] sm:$0xff]
    %v1701 = vld [vmem:[%s4 + $0x10] sm:$0xff]
    %v1702 = vld [vmem:[%s4 + $0x18] sm:$0xff]
    %v1703 = vld [vmem:[%s5 + $0x4] sm:$0x1]
    %v1704 = vlaneseq
    %v1705 = vshrl.u32 %v1704, 7
    %v1706 = vsub.s32 0, %v1705
    %v1707 = vrot.slane %v1703, %v1706
    %1714 = vrot.lane.b32.xlu0 %v1693, 64
    %v1715 = vpop.permute.xlu0 %1714
    %1716 = vrot.lane.b32.xlu0 %v1694, 64
    %v1717 = vpop.permute.xlu0 %1716
    %1718 = vrot.lane.b32.xlu0 %v1695, 64
    %v1719 = vpop.permute.xlu0 %1718
    %1720 = vrot.lane.b32.xlu0 %v1696, 64
    %v1721 = vpop.permute.xlu0 %1720
    %1722 = vrot.lane.b32.xlu0 %v1697, 64
    %v1723 = vpop.permute.xlu0 %1722
    %1724 = vrot.lane.b32.xlu0 %v1698, 64
    %v1725 = vpop.permute.xlu0 %1724
    %v1726 = vsel %vm429, %v1715, 0
    %v1728 = vsel %vm429, %v1717, 0
    %v1730 = vsel %vm429, %v1719, 0
    %v1732 = vsel %vm429, %v1721, 0
    %v1734 = vsel %vm429, %v1723, 0
    %v1736 = vsel %vm429, %v1725, 0
    %1738 = vmatprep.subr.mxu0 0.0
    %1739 = vmatpush1.msra.mxu0 %v1699
    %1740 = vmatprep.subr.mxu0 0.0
    %1741 = vmatpush1.msra.mxu0 %v1700
    %1742 = vmatprep.subr.mxu0 0.0
    %1743 = vmatpush1.msra.mxu0 %v1701
    %1744 = vmatprep.subr.mxu0 0.0
    %1745 = vmatpush1.msra.mxu0 %v1702
    %1746 = vmatprep.subr.mxu0 0.0
    %1747 = vmatpush1.msra.mxu0 0.0
    %1748 = vmatprep.subr.mxu0 0.0
    %1749 = vmatpush1.msra.mxu0 0.0
    %1750 = vmatprep.subr.mxu0 0.0
    %1751 = vmatpush1.msra.mxu0 0.0
    %1752 = vmatprep.subr.mxu0 0.0
    %1753 = vmatpush1.msra.mxu0 0.0
    %1754 = vmatprep.subr.mxu0 0.0
    %1755 = vmatpush1.msra.mxu0 0.0
    %1756 = vmatprep.subr.mxu0 0.0
    %1757 = vmatpush1.msra.mxu0 0.0
    %1758 = vmatprep.subr.mxu0 0.0
    %1759 = vmatpush1.msra.mxu0 0.0
    %1760 = vmatprep.subr.mxu0 0.0
    %1761 = vmatpush1.msra.mxu0 0.0
    %1762 = vmatprep.subr.mxu0 0.0
    %1763 = vmatpush1.msra.mxu0 0.0
    %1764 = vmatprep.subr.mxu0 0.0
    %1765 = vmatpush1.msra.mxu0 0.0
    %1766 = vmatprep.subr.mxu0 0.0
    %1767 = vmatpush1.msra.mxu0 0.0
    %1768 = vmatprep.subr.mxu0 0.0
    %1769 = vmatpush1.msra.mxu0 0.0
    %1770 = vmatprep.subr.mxu0 0.0
    %1771 = vmatpush1.msra.mxu0 0.0
    %1772 = vmatprep.subr.mxu0 0.0
    %1773 = vmatpush1.msra.mxu0 0.0
    %1774 = vmatprep.subr.mxu0 0.0
    %1775 = vmatpush1.msra.mxu0 0.0
    %1776 = vmatprep.subr.mxu0 0.0
    %1777 = vmatpush1.msra.mxu0 0.0
    %1778 = vmatprep.subr.mxu0 0.0
    %1779 = vmatpush1.msra.mxu0 0.0
    %1780 = vmatprep.subr.mxu0 0.0
    %1781 = vmatpush1.msra.mxu0 0.0
    %1782 = vmatprep.subr.mxu0 0.0
    %1783 = vmatpush1.msra.mxu0 0.0
    %1784 = vmatprep.subr.mxu0 0.0
    %1785 = vmatpush1.msra.mxu0 0.0
    %1786 = vmatprep.subr.mxu0 0.0
    %1787 = vmatpush1.msra.mxu0 0.0
    %1788 = vmatprep.subr.mxu0 0.0
    %1789 = vmatpush1.msra.mxu0 0.0
    %1790 = vmatprep.subr.mxu0 0.0
    %1791 = vmatpush1.msra.mxu0 0.0
    %1792 = vmatprep.subr.mxu0 0.0
    %1793 = vmatpush1.msra.mxu0 0.0
    %1794 = vmatprep.subr.mxu0 0.0
    %1795 = vmatpush1.msra.mxu0 0.0
    %1796 = vmatprep.subr.mxu0 0.0
    %1797 = vmatpush1.msra.mxu0 0.0
    %1798 = vmatprep.subr.mxu0 0.0
    %1799 = vmatpush1.msra.mxu0 0.0
    %1800 = vmatprep.subr.mxu0 0.0
    %1801 = vmatpush1.msra.mxu0 0.0
    %1802 = vmatprep.mubr.f32.mxu0 0.0
    %1803 = vmatmul.mubr.f32.gmra.mrb[0].mxu0 %v1726
    %v1804 = vpop.f32.mrb[0].mxu0
    %v1805 = vadd.f32 %v1707, %v1804
    %v1806 = vpop.f32.mrb[0].mxu0
    %1807 = vmatprep.mubr.f32.mxu0 0.0
    %1808 = vmatmul.mubr.f32.gmra.mrb[0].mxu0 %v1728
    %v1809 = vpop.f32.mrb[0].mxu0
    %v1810 = vadd.f32 %v1707, %v1809
    %v1811 = vpop.f32.mrb[0].mxu0
    %1812 = vmatprep.mubr.f32.mxu0 0.0
    %1813 = vmatmul.mubr.f32.gmra.mrb[0].mxu0 %v1730
    %v1814 = vpop.f32.mrb[0].mxu0
    %v1815 = vadd.f32 %v1707, %v1814
    %v1816 = vpop.f32.mrb[0].mxu0
    %1817 = vmatprep.mubr.f32.mxu0 0.0
    %1818 = vmatmul.mubr.f32.gmra.mrb[0].mxu0 %v1732
    %v1819 = vpop.f32.mrb[0].mxu0
    %v1820 = vadd.f32 %v1707, %v1819
    %v1821 = vpop.f32.mrb[0].mxu0
    %1822 = vmatprep.mubr.f32.mxu0 0.0
    %1823 = vmatmul.mubr.f32.gmra.mrb[0].mxu0 %v1734
    %v1824 = vpop.f32.mrb[0].mxu0
    %v1825 = vadd.f32 %v1707, %v1824
    %v1826 = vpop.f32.mrb[0].mxu0
    %1827 = vmatprep.mubr.f32.mxu0 0.0
    %1828 = vmatmul.mubr.f32.gmra.mrb[0].mxu0 %v1736
    %v1829 = vpop.f32.mrb[0].mxu0
    %v1830 = vadd.f32 %v1707, %v1829
    %v1831 = vpop.f32.mrb[0].mxu0
    %1832 = vdwg.mxu0
    %v1839 = vsel %vm429, %v1715, 0.0
    %v1840 = vsel %vm429, %v1717, 0.0
    %v1841 = vsel %vm429, %v1719, 0.0
    %v1842 = vsel %vm429, %v1721, 0.0
    %v1843 = vsel %vm429, %v1723, 0.0
    %v1844 = vsel %vm429, %v1725, 0.0
    %1845 = vst [vmem:[#allocation5] sm:$0xff] %v1839
    %1846 = vst [vmem:[#allocation5 + $0x8] sm:$0xff] %v1840
    %1847 = vst [vmem:[#allocation5 + $0x10] sm:$0xff] %v1841
    %1848 = vst [vmem:[#allocation5 + $0x18] sm:$0xff] %v1842
    %1849 = vst [vmem:[#allocation5 + $0x20] sm:$0xff] %v1843
    %1850 = vst [vmem:[#allocation5 + $0x28] sm:$0xff] %v1844
    %1851 = vst [vmem:[%s7] sm:$0xff] %v1805
    %1852 = vst [vmem:[%s7 + $0x8] sm:$0xff] %v1810
    %1853 = vst [vmem:[%s7 + $0x10] sm:$0xff] %v1815
    %1854 = vst [vmem:[%s7 + $0x18] sm:$0xff] %v1820
    %1855 = vst [vmem:[%s7 + $0x20] sm:$0xff] %v1825
    %1856 = vst [vmem:[%s7 + $0x28] sm:$0xff] %v1830
    // Predicated region
    $region30: #{prediction_generation_forward.1} parent=1 // pred_check
      _
    $region31: #{prediction_generation_forward.1} parent=1 // pred_check_branch
      %1858 = sbr.rel (0) target = $region33
    $region32: #{prediction_generation_forward.1} parent=1 // pred_region
      %s1860 = ssub.s32 768, 768
      %1861 = vsyncadd [#allocation4], %s1860
      %s1862 = sshll.u32 [#allocation5], 4
      %s1863 = int_to_ptr.vmem [resolvable:$true] %s1862
      %1868 = dma.vmem_to_hbm [thread:$0]  %s1863, 768, %s6, [#allocation4], 128, 128, 8
    $region33: #{prediction_generation_forward.1} parent=1 // pred_fallthru
      _
    // Predicated region
    $region34: #{prediction_generation_forward.1} parent=1 // pred_check
      _
    $region35: #{prediction_generation_forward.1} parent=1 // pred_check_branch
      %1870 = sbr.rel (0) target = $region37
    $region36: #{prediction_generation_forward.1} parent=1 // pred_region
      _
    $region37: #{prediction_generation_forward.1} parent=1 // pred_fallthru
      _
    // Predicated region
    $region38: #{prediction_generation_forward.1} parent=1 // pred_check
      _
    $region39: #{prediction_generation_forward.1} parent=1 // pred_check_branch
      %1872 = sbr.rel (0) target = $region41
    $region40: #{prediction_generation_forward.1} parent=1 // pred_region
      %1873 = dma.done [#allocation4], 768
    $region41: #{prediction_generation_forward.1} parent=1 // pred_fallthru
      _
    // Predicated region
    $region42: #{prediction_generation_forward.1} parent=1 // pred_check
      _
    $region43: #{prediction_generation_forward.1} parent=1 // pred_check_branch
      %1875 = sbr.rel (0) target = $region45
    $region44: #{prediction_generation_forward.1} parent=1 // pred_region
      _
    $region45: #{prediction_generation_forward.1} parent=1 // pred_fallthru
      _
    %1876 = vsyncpa [#allocation3], 1
    %1877 = vsyncpa [#allocation4], 1

</llo_original>
